<compile_context>
chip_gen: v5e
topology: v5e:2x2
jax: 0.10.0
libtpu: 0.0.40
codegen_flags: <defaults>
</compile_context>

<pallas_src>
import math

import jax
import jax.numpy as jnp
import numpy as np
from jax import lax
from jax.experimental import pallas as pl
from jax.experimental.pallas import tpu as pltpu

EPS = float(jnp.finfo(jnp.float32).eps)   # torch nn.RMSNorm(eps=None) on fp32
COMPUTE_DTYPE = jnp.bfloat16              # MXU operand dtype (f32 accumulation)
ROW_TILE = 256                            # rows per grid step (projection / MLP kernels)
COL_TILE = 512                            # output-N tile for weight matmuls
HID_TILE = 512                            # MLP hidden-dim (down-proj K) tile
NEG_INF = -1e30


def _vmem_limit_bytes():
    # v5e/v6e: 128 MiB physical -> ~96 MiB scoped; v7x: 64 MiB -> ~48 MiB.
    try:
        cap = pltpu.get_tpu_info().vmem_capacity_bytes
    except Exception:
        cap = 64 * 1024 * 1024
    return int(max(32 * 1024 * 1024, min(96 * 1024 * 1024, cap * 3 // 4)))


VMEM_LIMIT = _vmem_limit_bytes()


def _pick_tile(n, target, align):
    """Largest tile <= target that divides n and is a multiple of align (or n itself)."""
    if n <= target or n % align:
        return n
    t = (min(target, n) // align) * align
    while n % t:
        t -= align
    return t


# ----------------------------- Pallas kernels ------------------------------

def _norm_matmul_kernel(x_ref, wn_ref, w_ref, o_ref, nbuf):
    """o = RMSNorm(x) @ W_tile.  Norm computed once per row tile (j == 0) into scratch."""
    @pl.when(pl.program_id(1) == 0)
    def _():
        xf = x_ref[...].astype(jnp.float32)
        ms = jnp.mean(xf * xf, axis=-1, keepdims=True)
        nbuf[...] = (xf * jax.lax.rsqrt(ms + EPS)
                     * wn_ref[...].astype(jnp.float32)).astype(nbuf.dtype)
    o_ref[...] = jnp.dot(nbuf[...], w_ref[...],
                         preferred_element_type=jnp.float32).astype(o_ref.dtype)


def norm_matmul(x2d, w_norm, w, out_dtype=None):
    N, D = x2d.shape
    Dout = w.shape[1]
    out_dtype = out_dtype or x2d.dtype
    tm = _pick_tile(N, ROW_TILE, 16)
    tn = _pick_tile(Dout, COL_TILE, 128)
    return pl.pallas_call(
        _norm_matmul_kernel,
        out_shape=jax.ShapeDtypeStruct((N, Dout), out_dtype),
        grid=(N // tm, Dout // tn),
        in_specs=[pl.BlockSpec((tm, D), lambda i, j: (i, 0)),
                  pl.BlockSpec((1, D), lambda i, j: (0, 0)),
                  pl.BlockSpec((D, tn), lambda i, j: (0, j))],
        out_specs=pl.BlockSpec((tm, tn), lambda i, j: (i, j)),
        scratch_shapes=[pltpu.VMEM((tm, D), COMPUTE_DTYPE)],
        compiler_params=pltpu.CompilerParams(
            dimension_semantics=("parallel", "arbitrary"),   # norm cache needs j sweep
            vmem_limit_bytes=VMEM_LIMIT),
    )(x2d, w_norm.reshape(1, D), w)


def _rope_k_kernel(k_ref, cos_ref, sin_ref, o_ref):
    """One-pass half-split ("rotate-half") RoPE on a single head's K tile."""
    hd = k_ref.shape[-1]
    kf = k_ref[...].astype(jnp.float32)
    kf = kf * cos_ref[...] + pltpu.roll(kf, hd // 2, axis=1) * sin_ref[...]
    o_ref[...] = kf.astype(o_ref.dtype)


def rope_k(qkv, cos_full, sin_rot, *, T, num_heads):
    """Pre-rotate K once so the flash inner loop never re-applies K-RoPE."""
    N, threeD = qkv.shape
    D = threeD // 3
    H = num_heads
    hd = D // H
    tm = _pick_tile(T, ROW_TILE, 16)          # divides T -> position-contiguous tiles
    ntq = T // tm
    return pl.pallas_call(
        _rope_k_kernel,
        out_shape=jax.ShapeDtypeStruct((N, D), qkv.dtype),
        grid=(N // tm, H),
        in_specs=[pl.BlockSpec((tm, hd), lambda i, h: (i, H + h)),   # K cols of qkv
                  pl.BlockSpec((tm, hd), lambda i, h: (i % ntq, 0)),
                  pl.BlockSpec((tm, hd), lambda i, h: (i % ntq, 0))],
        out_specs=pl.BlockSpec((tm, hd), lambda i, h: (i, h)),
        compiler_params=pltpu.CompilerParams(
            dimension_semantics=("parallel", "parallel"),
            vmem_limit_bytes=VMEM_LIMIT),
    )(qkv, cos_full, sin_rot)


def _flash_attn_kernel(q_ref, k_ref, v_ref, cos_ref, sin_ref, o_ref,
                       qbuf, m_sc, l_sc, acc_sc):
    """Flash-style causal attention.  Q-RoPE + scaling done once per q block (ki==0)."""
    qi = pl.program_id(1)
    ki = pl.program_id(2)
    tq, hd = q_ref.shape
    tk = k_ref.shape[0]

    @pl.when(ki == 0)
    def _():
        qf = q_ref[...].astype(jnp.float32)
        qf = qf * cos_ref[...] + pltpu.roll(qf, hd // 2, axis=1) * sin_ref[...]
        qbuf[...] = (qf * (1.0 / math.sqrt(hd))).astype(qbuf.dtype)
        m_sc[...] = jnp.full(m_sc.shape, -jnp.inf, m_sc.dtype)
        l_sc[...] = jnp.zeros(l_sc.shape, l_sc.dtype)
        acc_sc[...] = jnp.zeros(acc_sc.shape, acc_sc.dtype)

    def online_update(s):
        m_prev = m_sc[...]
        m_new = jnp.maximum(m_prev, s.max(axis=-1, keepdims=True))
        alpha = jnp.exp(m_prev - m_new)
        p = jnp.exp(s - m_new)
        l_sc[...] = alpha * l_sc[...] + p.sum(axis=-1, keepdims=True)
        acc_sc[...] = alpha * acc_sc[...] + jnp.dot(
            p.astype(v_ref.dtype), v_ref[...], preferred_element_type=jnp.float32)
        m_sc[...] = m_new

    # Block has at least one unmasked column (below / on the causal diagonal).
    needed = ki * tk <= qi * tq + (tq - 1)

    @pl.when(needed)
    def _():
        # K consumed in native (tk, hd) layout — no transpose.
        s = lax.dot_general(qbuf[...], k_ref[...], (((1,), (1,)), ((), ())),
                            preferred_element_type=jnp.float32)
        straddles = ki * tk + (tk - 1) > qi * tq      # diagonal cuts through this block

        @pl.when(straddles)
        def _():
            row = qi * tq + lax.broadcasted_iota(jnp.int32, (tq, tk), 0)
            col = ki * tk + lax.broadcasted_iota(jnp.int32, (tq, tk), 1)
            online_update(jnp.where(col <= row, s, NEG_INF))

        @pl.when(jnp.logical_not(straddles))          # fully below diagonal: no mask work
        def _():
            online_update(s)

    @pl.when(ki == pl.num_programs(2) - 1)
    def _():
        o_ref[...] = (acc_sc[...] *
                      pl.reciprocal(l_sc[...], approx=True)).astype(o_ref.dtype)


def flash_attention(qkv, k_rot, cos_full, sin_rot, *, T, num_heads,
                    block_q=256, block_k=512):
    """Q/V read head-folded from the (N, 3D) qkv buffer, K from k_rot; output (N, D)."""
    N, threeD = qkv.shape
    D = threeD // 3
    H = num_heads
    hd = D // H
    B = N // T
    tq = _pick_tile(T, block_q, 16)
    tk = _pick_tile(T, block_k, 16)
    nq, nk = T // tq, T // tk

    def kclamp(qi, ki):
        # Above-diagonal steps reuse the last needed K/V block -> no dead DMA.
        return jnp.minimum(ki, (qi * tq + tq - 1) // tk)

    q_spec = pl.BlockSpec((tq, hd), lambda bh, qi, ki: ((bh // H) * nq + qi, bh % H))
    k_spec = pl.BlockSpec((tk, hd),
                          lambda bh, qi, ki: ((bh // H) * nk + kclamp(qi, ki), bh % H))
    v_spec = pl.BlockSpec((tk, hd),
                          lambda bh, qi, ki: ((bh // H) * nk + kclamp(qi, ki),
                                              2 * H + bh % H))
    c_spec = pl.BlockSpec((tq, hd), lambda bh, qi, ki: (qi, 0))
    o_spec = pl.BlockSpec((tq, hd), lambda bh, qi, ki: ((bh // H) * nq + qi, bh % H))

    return pl.pallas_call(
        _flash_attn_kernel,
        out_shape=jax.ShapeDtypeStruct((N, D), qkv.dtype),
        grid=(B * H, nq, nk),
        in_specs=[q_spec, k_spec, v_spec, c_spec, c_spec],
        out_specs=o_spec,
        scratch_shapes=[pltpu.VMEM((tq, hd), qkv.dtype),     # rotated+scaled Q
                        pltpu.VMEM((tq, 1), jnp.float32),    # running max
                        pltpu.VMEM((tq, 1), jnp.float32),    # running denom
                        pltpu.VMEM((tq, hd), jnp.float32)],  # f32 accumulator
        compiler_params=pltpu.CompilerParams(
            dimension_semantics=("parallel", "parallel", "arbitrary"),
            vmem_limit_bytes=VMEM_LIMIT),
    )(qkv, k_rot, qkv, cos_full, sin_rot)


def _matmul_res_kernel(a_ref, w_ref, r_ref, o_ref):
    """o = residual + a @ W_tile  (residual add fused, bf16 MXU operands)."""
    y = jnp.dot(a_ref[...].astype(COMPUTE_DTYPE), w_ref[...],
                preferred_element_type=jnp.float32)
    o_ref[...] = (r_ref[...].astype(jnp.float32) + y).astype(o_ref.dtype)


def matmul_residual(a, w, res):
    N, K = a.shape
    Dout = w.shape[1]
    tm = _pick_tile(N, ROW_TILE, 16)
    tn = _pick_tile(Dout, COL_TILE, 128)
    return pl.pallas_call(
        _matmul_res_kernel,
        out_shape=jax.ShapeDtypeStruct((N, Dout), res.dtype),
        grid=(N // tm, Dout // tn),
        in_specs=[pl.BlockSpec((tm, K), lambda i, j: (i, 0)),
                  pl.BlockSpec((K, tn), lambda i, j: (0, j)),
                  pl.BlockSpec((tm, tn), lambda i, j: (i, j))],
        out_specs=pl.BlockSpec((tm, tn), lambda i, j: (i, j)),
        compiler_params=pltpu.CompilerParams(
            dimension_semantics=("parallel", "parallel"),
            vmem_limit_bytes=VMEM_LIMIT),
    )(a, w, res)


def _norm_mlp_res_kernel(x_ref, wn_ref, wg_ref, wu_ref, wd_ref, o_ref, hbuf, acc):
    """o = x + SwiGLU(RMSNorm(x)) @ Wd, hidden dim tiled with f32 accumulator."""
    @pl.when(pl.program_id(1) == 0)
    def _():
        xf = x_ref[...].astype(jnp.float32)
        ms = jnp.mean(xf * xf, axis=-1, keepdims=True)
        hbuf[...] = (xf * jax.lax.rsqrt(ms + EPS)
                     * wn_ref[...].astype(jnp.float32)).astype(hbuf.dtype)
        acc[...] = xf                                    # residual

    h = hbuf[...]
    g = jnp.dot(h, wg_ref[...], preferred_element_type=jnp.float32)
    u = jnp.dot(h, wu_ref[...], preferred_element_type=jnp.float32)
    act = (g * jax.nn.sigmoid(g) * u).astype(h.dtype)    # SiLU(gate) * up, bf16 for MXU
    acc[...] += jnp.dot(act, wd_ref[...], preferred_element_type=jnp.float32)

    @pl.when(pl.program_id(1) == pl.num_programs(1) - 1)
    def _():
        o_ref[...] = acc[...].astype(o_ref.dtype)


def norm_mlp_residual(x2d, w_norm, wg, wu, wd):
    N, D = x2d.shape
    Hm = wg.shape[1]
    tm = _pick_tile(N, ROW_TILE, 16)
    th = _pick_tile(Hm, HID_TILE, 128)
    return pl.pallas_call(
        _norm_mlp_res_kernel,
        out_shape=jax.ShapeDtypeStruct((N, D), x2d.dtype),
        grid=(N // tm, Hm // th),
        in_specs=[pl.BlockSpec((tm, D), lambda i, h: (i, 0)),
                  pl.BlockSpec((1, D), lambda i, h: (0, 0)),
                  pl.BlockSpec((D, th), lambda i, h: (0, h)),
                  pl.BlockSpec((D, th), lambda i, h: (0, h)),
                  pl.BlockSpec((th, D), lambda i, h: (h, 0))],
        out_specs=pl.BlockSpec((tm, D), lambda i, h: (i, 0)),
        scratch_shapes=[pltpu.VMEM((tm, D), COMPUTE_DTYPE),
                        pltpu.VMEM((tm, D), jnp.float32)],
        compiler_params=pltpu.CompilerParams(
            dimension_semantics=("parallel", "arbitrary"),
            vmem_limit_bytes=VMEM_LIMIT),
    )(x2d, w_norm.reshape(1, D), wg, wu, wd)


# ------------------------------- JAX glue -----------------------------------

def rope_tables(head_dim, seq_len, theta=10000.0):
    """cos/sin in interleaved-half (reference) and half-split/rotate forms (kernels)."""
    inv = 1.0 / (theta ** (np.arange(0, head_dim, 2, dtype=np.float64) / head_dim))
    ang = np.outer(np.arange(seq_len, dtype=np.float64), inv)        # (T, hd//2)
    cos, sin = np.cos(ang), np.sin(ang)
    cos_full = np.concatenate([cos, cos], axis=-1)                   # (T, hd)
    sin_rot = np.concatenate([-sin, sin], axis=-1)                   # (T, hd)
    return (jnp.asarray(cos, jnp.float32), jnp.asarray(sin, jnp.float32),
            jnp.asarray(cos_full, jnp.float32), jnp.asarray(sin_rot, jnp.float32))


def rope_half_split_permutation(dim, num_heads):
    hd = dim // num_heads
    idx = np.concatenate([np.arange(0, hd, 2), np.arange(1, hd, 2)])
    return np.concatenate([h * hd + idx for h in range(num_heads)])


def prepare_params(params, compute_dtype=COMPUTE_DTYPE):
    """Concat Q/K/V weights (Q/K columns pre-permuted to half-split RoPE layout, which is
    mathematically identical to torch's interleaved RoPE since the permutation cancels in
    q.k), and store all matmul weights in the MXU compute dtype (bf16)."""
    perm = rope_half_split_permutation(params["wq"].shape[1], params["num_heads"])
    wqkv = jnp.concatenate(
        [params["wq"][:, perm], params["wk"][:, perm], params["wv"]], axis=1)
    p = dict(params)
    p["wqkv"] = wqkv.astype(compute_dtype)
    for name in ("wo", "w_gate", "w_up", "w_down"):
        p[name] = params[name].astype(compute_dtype)
    return p


def attention_layer_forward(x, params, cos_full, sin_rot):
    B, T, D = x.shape
    H = params["num_heads"]
    N = B * T
    x2 = x.reshape(N, D)

    # --- x = x + attn(attn_norm(x)) ---
    # Q/K/V are read head-folded straight out of the (N, 3D) qkv buffer and the attention
    # output is written head-folded into (N, D): no split/merge transposes (no extra HBM).
    qkv = norm_matmul(x2, params["attn_norm_w"], params["wqkv"],
                      out_dtype=COMPUTE_DTYPE)                        # fused norm + QKV
    k_rot = rope_k(qkv, cos_full, sin_rot, T=T, num_heads=H)          # K-RoPE, one pass
    o = flash_attention(qkv, k_rot, cos_full, sin_rot, T=T, num_heads=H)
    x2 = matmul_residual(o, params["wo"], x2)                         # fused residual add

    # --- x = x + mlp(mlp_norm(x)) ---
    x2 = norm_mlp_residual(x2, params["mlp_norm_w"],
                           params["w_gate"], params["w_up"], params["w_down"])
    return x2.reshape(B, T, D)


# ------------------------------ reference -----------------------------------

def apply_rope_interleaved(x, cos, sin):
    # x: (B, T, H, hd); interleaved pairs (matches torch view_as_complex)
    xr = x[..., 0::2]
    xi = x[..., 1::2]
    c = cos[None, :, None, :]
    s = sin[None, :, None, :]
    yr = xr * c - xi * s
    yi = xr * s + xi * c
    return jnp.stack([yr, yi], axis=-1).reshape(x.shape)


def reference_forward(x, params, cos, sin):
    B, T, D = x.shape
    H = params["num_heads"]
    hd = D // H

    def rms(v, w):
        ms = jnp.mean(v * v, -1, keepdims=True)
        return v * jax.lax.rsqrt(ms + EPS) * w

    h = rms(x, params["attn_norm_w"])
    q = (h @ params["wq"]).reshape(B, T, H, hd)
    k = (h @ params["wk"]).reshape(B, T, H, hd)
    v = (h @ params["wv"]).reshape(B, T, H, hd)
    q = apply_rope_interleaved(q, cos, sin)
    k = apply_rope_interleaved(k, cos, sin)
    q, k, v = (t.transpose(0, 2, 1, 3) for t in (q, k, v))
    s = jnp.einsum("bhqd,bhkd->bhqk", q, k) / math.sqrt(hd)
    mask = jnp.tril(jnp.ones((T, T), bool))
    s = jnp.where(mask, s, NEG_INF)
    p = jax.nn.softmax(s, axis=-1)
    o = jnp.einsum("bhqk,bhkd->bhqd", p, v).transpose(0, 2, 1, 3).reshape(B, T, D)
    x = x + o @ params["wo"]
    h2 = rms(x, params["mlp_norm_w"])
    g = h2 @ params["w_gate"]
    u = h2 @ params["w_up"]
    return x + (jax.nn.silu(g) * u) @ params["w_down"]


if __name__ == "__main__":
    B, T, D, H = 2, 128, 256, 2          # head_dim = 128 (lane-aligned)
    hd = D // H
    H_MLP = 4 * D                        # mlp_scale = 4

    key = jax.random.PRNGKey(0)
    kx, kq, kk, kv, ko, kg, ku, kd = jax.random.split(key, 8)
    scale = 0.02
    params = {
        "num_heads": H,
        "attn_norm_w": jnp.ones((D,), jnp.float32),   # torch RMSNorm init
        "mlp_norm_w": jnp.ones((D,), jnp.float32),
        "wq": scale * jax.random.normal(kq, (D, D), jnp.float32),
        "wk": scale * jax.random.normal(kk, (D, D), jnp.float32),
        "wv": scale * jax.random.normal(kv, (D, D), jnp.float32),
        "wo": scale * jax.random.normal(ko, (D, D), jnp.float32),
        "w_gate": scale * jax.random.normal(kg, (D, H_MLP), jnp.float32),
        "w_up": scale * jax.random.normal(ku, (D, H_MLP), jnp.float32),
        "w_down": scale * jax.random.normal(kd, (H_MLP, D), jnp.float32),
    }
    x = jax.random.normal(kx, (B, T, D), jnp.float32)

    cos_half, sin_half, cos_full, sin_rot = rope_tables(hd, T)
    kernel_params = prepare_params(params)

    out = jax.block_until_ready(
        attention_layer_forward(x, kernel_params, cos_full, sin_rot))
    ref = jax.block_until_ready(reference_forward(x, params, cos_half, sin_half))
    # bf16 MXU operands (f32 accumulation) vs. pure-f32 reference -> 2e-2 tolerance.
    np.testing.assert_allclose(np.asarray(out, np.float32), np.asarray(ref),
                               rtol=2e-2, atol=2e-2)

    print("KERNEL_OK")
</pallas_src>

<mosaic_0001>
module attributes {stable_mosaic.version = 11 : i64} {
  func.func @_norm_matmul_kernel(%arg0: i32, %arg1: i32, %arg2: memref<256x256xf32, #tpu.memory_space<vmem>>, %arg3: memref<1x256xf32, #tpu.memory_space<vmem>>, %arg4: memref<256x384xbf16, #tpu.memory_space<vmem>>, %arg5: memref<256x384xbf16, #tpu.memory_space<vmem>>, %arg6: memref<256x256xbf16, #tpu.memory_space<vmem>>) attributes {dimension_semantics = [#tpu.dimension_semantics<parallel>, #tpu.dimension_semantics<arbitrary>], iteration_bounds = array<i64: 1, 2>, scalar_prefetch = 0 : i64, scratch_operands = 1 : i64, tpu.core_type = #tpu.core_type<tc>, window_params = [{transform_indices = @transform_0, window_bounds = array<i64: 256, 256>}, {pipeline_mode = #tpu.pipeline_mode<synchronous>, transform_indices = @transform_1, window_bounds = array<i64: 1, 256>}, {transform_indices = @transform_2, window_bounds = array<i64: 256, 384>}, {transform_indices = @transform_3, window_bounds = array<i64: 256, 384>}]} {
    %c0_i32 = arith.constant 0 : i32
    %0 = arith.cmpi eq, %arg1, %c0_i32 : i32
    %1 = arith.extui %0 : i1 to i32
    %c0_i32_0 = arith.constant 0 : i32
    %2 = arith.cmpi ne, %1, %c0_i32_0 : i32
    scf.if %2 {
      %c0_6 = arith.constant 0 : index
      %c0_7 = arith.constant 0 : index
      %8 = vector.load %arg2[%c0_6, %c0_7] : memref<256x256xf32, #tpu.memory_space<vmem>>, vector<256x256xf32>
      %9 = arith.mulf %8, %8 : vector<256x256xf32>
      %cst_8 = arith.constant dense<0.000000e+00> : vector<256xf32>
      %10 = vector.multi_reduction <add>, %9, %cst_8 [1] : vector<256x256xf32> to vector<256xf32>
      %11 = vector.shape_cast %10 : vector<256xf32> to vector<256x1xf32>
      %cst_9 = arith.constant 2.560000e+02 : f32
      %12 = vector.broadcast %cst_9 : f32 to vector<256x1xf32>
      %13 = arith.divf %11, %12 : vector<256x1xf32>
      %cst_10 = arith.constant 1.1920929E-7 : f32
      %14 = vector.broadcast %cst_10 : f32 to vector<256x1xf32>
      %15 = arith.addf %13, %14 : vector<256x1xf32>
      %16 = math.rsqrt %15 : vector<256x1xf32>
      %17 = vector.broadcast %16 : vector<256x1xf32> to vector<256x256xf32>
      %18 = arith.mulf %8, %17 : vector<256x256xf32>
      %c0_11 = arith.constant 0 : index
      %c0_12 = arith.constant 0 : index
      %19 = vector.load %arg3[%c0_11, %c0_12] : memref<1x256xf32, #tpu.memory_space<vmem>>, vector<1x256xf32>
      %20 = vector.broadcast %19 : vector<1x256xf32> to vector<256x256xf32>
      %21 = arith.mulf %18, %20 : vector<256x256xf32>
      %22 = arith.truncf %21 : vector<256x256xf32> to vector<256x256xbf16>
      %c0_13 = arith.constant 0 : index
      %c0_14 = arith.constant 0 : index
      %23 = vector.load %arg6[%c0_13, %c0_14] : memref<256x256xbf16, #tpu.memory_space<vmem>>, vector<256x256xbf16>
      tpu.vector_store %arg6[%c0_13, %c0_14], %22 {strides = array<i32>} : memref<256x256xbf16, #tpu.memory_space<vmem>>, vector<256x256xbf16>,
    } else {
    }
    %c0 = arith.constant 0 : index
    %c0_1 = arith.constant 0 : index
    %3 = vector.load %arg6[%c0, %c0_1] : memref<256x256xbf16, #tpu.memory_space<vmem>>, vector<256x256xbf16>
    %c0_2 = arith.constant 0 : index
    %c0_3 = arith.constant 0 : index
    %4 = vector.load %arg4[%c0_2, %c0_3] : memref<256x384xbf16, #tpu.memory_space<vmem>>, vector<256x384xbf16>
    %cst = arith.constant dense<0.000000e+00> : vector<256x384xf32>
    %5 = tpu.matmul %3, %4, %cst {dimension_numbers = #tpu.dot_dimension_numbers<[1], [0], [0], [1], [0, 0, 1, 1], [], []>} : vector<256x256xbf16>, vector<256x384xbf16>, vector<256x384xf32> -> vector<256x384xf32>
    %6 = arith.truncf %5 : vector<256x384xf32> to vector<256x384xbf16>
    %c0_4 = arith.constant 0 : index
    %c0_5 = arith.constant 0 : index
    %7 = vector.load %arg5[%c0_4, %c0_5] : memref<256x384xbf16, #tpu.memory_space<vmem>>, vector<256x384xbf16>
    tpu.vector_store %arg5[%c0_4, %c0_5], %6 {strides = array<i32>} : memref<256x384xbf16, #tpu.memory_space<vmem>>, vector<256x384xbf16>,
    return
  }
  func.func @transform_0(%arg0: i32, %arg1: i32) -> (i32, i32) {
    %c0_i32 = arith.constant 0 : i32
    %c0_i32_0 = arith.constant 0 : i32
    return %arg0, %c0_i32 : i32, i32
  }
  func.func @transform_1(%arg0: i32, %arg1: i32) -> (i32, i32) {
    %c0_i32 = arith.constant 0 : i32
    %c0_i32_0 = arith.constant 0 : i32
    %c0_i32_1 = arith.constant 0 : i32
    return %c0_i32, %c0_i32_0 : i32, i32
  }
  func.func @transform_2(%arg0: i32, %arg1: i32) -> (i32, i32) {
    %c0_i32 = arith.constant 0 : i32
    %c0_i32_0 = arith.constant 0 : i32
    return %c0_i32, %arg1 : i32, i32
  }
  func.func @transform_3(%arg0: i32, %arg1: i32) -> (i32, i32) {
    %c0_i32 = arith.constant 0 : i32
    return %arg0, %arg1 : i32, i32
  }
}

</mosaic_0001>

<llo_original>
// kernel: tpu_custom_call.1
$region0: #{tpu_custom_call.1}
  #allocation0 [shape = 'u32[]', space=smem, size = 0x4, offset = 0x4, fixed_abs, tag = 'smem constant byte address 0x4 - core index']
  #allocation1 [shape = 'u32[72,128]{1,0:T(1,128)}', space=vmem, size = 0x9000, scoped, tag = 'internal scratch']
  #allocation2 [shape = 'bf16[256,256]{1,0:T(8,128)(2,1)}', space=vmem, size = 0x20000, scoped, tag = 'scratch operand']
  %s0 = inlined_call_operand.hbm [shape: f32[256,256], index: 0, kind: input, shape index: {}]
  %s1 = inlined_call_operand.hbm [shape: f32[1,256], index: 1, kind: input, shape index: {}]
  %s2 = inlined_call_operand.hbm [shape: bf16[256,768], index: 2, kind: input, shape index: {}]
  %s3 = inlined_call_operand.hbm [shape: bf16[256,768], index: 3, kind: output, shape index: {}]
  %s4 = sld [smem:[#allocation0]]
  $region61: #{tpu_custom_call.1} parent=0
    _
  %s6 = ssub.s32 1, %s4
  %s7 = scalar_select 0, %s6, %s4
  $region1: #{tpu_custom_call.1} parent=0
    #allocation3 [shape = 'u8[262144]{0}', space=vmem, size = 0x40000, scoped, tag = 'input window, operand 0, single buffered']
    #allocation4 [shape = 's32[2]{0}', space=sflag, size = 0x8, scoped, tag = 'scoped memory for tpu_custom_call.1']
    #allocation5 [shape = 's32[2]{0}', space=sflag, size = 0x8, scoped, tag = 'scoped memory for tpu_custom_call.1']
    #allocation6 [shape = 'u8[1024]{0}', space=vmem, size = 0x400, scoped, tag = 'input window, operand 1, single buffered']
    #allocation7 [shape = 's32[1]{0}', space=sflag, size = 0x4, scoped, tag = 'scoped memory for tpu_custom_call.1']
    #allocation8 [shape = 'u8[393216]{0}', space=vmem, size = 0x60000, scoped, tag = 'input window, operand 2']
    #allocation9 [shape = 'u8[393216]{0}', space=vmem, size = 0x60000, scoped, tag = 'output window, operand 0']
    %8 = vsyncpa [#allocation4], 0
    %9 = vsyncpa [#allocation7], 0
    %10 = vsyncpa [#allocation5], 0
    %s11 = scalar_lea.sflag [#allocation5], 1
    %12 = vsyncpa %s11, 0
    loop: start=0, step=1, limit=4
    $region2: #{tpu_custom_call.1} parent=1 // loop_pre_header
      _
    $region3: #{tpu_custom_call.1} parent=1 // loop_header
      %s14 = sphi 0, %s18
      %p15 = scmp.ge.s32.totalorder %s14, 4
      %s21 = sphi 0, %s33
      %s22 = sphi 0, %s29
      %s23 = sphi 0, %s21
      %s24 = sphi 0, %s22
      %s25 = sphi 0, %s23
      %s26 = sphi 0, %s24
      %s36 = sphi 0, %s38
      %s39 = sphi 0, %s36
      %s40 = sphi 0, %s39
      %s56 = sphi 0, %s40
      %s60 = sphi 0, %s60
      %s62 = sphi 0, %s60
      %s63 = sphi 0, %s62
      %s77 = sphi 0, %s63
      %s83 = sphi 0, %s85
      %s86 = sphi 0, %s83
      %s87 = sphi 0, %s86
      %s103 = sphi 0, %s87
      %s111 = sphi 0, %s113
      %s114 = sphi 0, %s111
      %s115 = sphi 0, %s114
      %s131 = sphi 0, %s115
    $region4: #{tpu_custom_call.1} parent=1 // loop_header_branch
      %17 = sbr.rel (%p15) target = $region8
    $region5: #{tpu_custom_call.1} parent=1 // loop_body
      %s19 = ssub.s32 %s14, 1
      %s20 = ssub.s32 %s14, 2
      %s27 = sadd.s32 1, %s22
      %p28 = scmp.ge.s32.totalorder %s27, 2
      %s29 = scalar_select %p28, 0, %s27
      %s30 = sadd.s32 1, %s21
      %s31 = scalar_select %p28, %s30, %s21
      %p32 = scmp.ge.s32.totalorder %s31, 1
      %s33 = scalar_select %p32, 0, %s31
      %s34 = ssub.s32 %s21, %s33
      %p35 = scmp.eq.s32.totalorder %s34, 0
      %s37 = sadd.s32 %s36, 1
      %s38 = scalar_select %p35, %s36, %s37
      %p41 = pneg %p35
      %p42 = scmp.eq.s32.totalorder %s14, 1
      %p43 = por %p41, %p42
      %p44 = scmp.ne.s32.totalorder %s36, %s39
      %p45 = scmp.eq.s32.totalorder %s14, 0
      %p46 = por %p44, %p45
      %p47 = scmp.ne.s32.totalorder %s36, %s39
      %p48 = scmp.eq.s32.totalorder %s19, 1
      %p49 = por %p47, %p48
      %p50 = scmp.ne.s32.totalorder %s39, %s40
      %p51 = scmp.eq.s32.totalorder %s19, 0
      %p52 = por %p50, %p51
      %p53 = scmp.ne.s32.totalorder %s39, %s40
      %p54 = scmp.eq.s32.totalorder %s20, 1
      %p55 = por %p53, %p54
      %p57 = scmp.ne.s32.totalorder %s40, %s56
      %p58 = scmp.eq.s32.totalorder %s20, 0
      %p59 = por %p57, %p58
      %s61 = sadd.s32 %s60, 1
      %p64 = scmp.eq.s32.totalorder %s14, 1
      %p65 = scmp.ne.s32.totalorder %s60, %s62
      %p66 = scmp.eq.s32.totalorder %s14, 0
      %p67 = por %p65, %p66
      %p68 = scmp.ne.s32.totalorder %s60, %s62
      %p69 = scmp.eq.s32.totalorder %s19, 1
      %p70 = por %p68, %p69
      %p71 = scmp.ne.s32.totalorder %s62, %s63
      %p72 = scmp.eq.s32.totalorder %s19, 0
      %p73 = por %p71, %p72
      %p74 = scmp.ne.s32.totalorder %s62, %s63
      %p75 = scmp.eq.s32.totalorder %s20, 1
      %p76 = por %p74, %p75
      %p78 = scmp.ne.s32.totalorder %s63, %s77
      %p79 = scmp.eq.s32.totalorder %s20, 0
      %p80 = por %p78, %p79
      %s81 = ssub.s32 %s22, %s29
      %p82 = scmp.eq.s32.totalorder %s81, 0
      %s84 = sadd.s32 %s83, 1
      %s85 = scalar_select %p82, %s83, %s84
      %p88 = pneg %p82
      %p89 = scmp.eq.s32.totalorder %s14, 1
      %p90 = por %p88, %p89
      %p91 = scmp.ne.s32.totalorder %s83, %s86
      %p92 = scmp.eq.s32.totalorder %s14, 0
      %p93 = por %p91, %p92
      %p94 = scmp.ne.s32.totalorder %s83, %s86
      %p95 = scmp.eq.s32.totalorder %s19, 1
      %p96 = por %p94, %p95
      %p97 = scmp.ne.s32.totalorder %s86, %s87
      %p98 = scmp.eq.s32.totalorder %s19, 0
      %p99 = por %p97, %p98
      %p100 = scmp.ne.s32.totalorder %s86, %s87
      %p101 = scmp.eq.s32.totalorder %s20, 1
      %p102 = por %p100, %p101
      %p104 = scmp.ne.s32.totalorder %s87, %s103
      %p105 = scmp.eq.s32.totalorder %s20, 0
      %p106 = por %p104, %p105
      %s107 = ssub.s32 %s21, %s33
      %s108 = ssub.s32 %s22, %s29
      %s109 = sor.u32 %s107, %s108
      %p110 = scmp.eq.s32.totalorder %s109, 0
      %s112 = sadd.s32 %s111, 1
      %s113 = scalar_select %p110, %s111, %s112
      %p116 = pneg %p110
      %p117 = scmp.eq.s32.totalorder %s14, 1
      %p118 = por %p116, %p117
      %p119 = scmp.ne.s32.totalorder %s111, %s114
      %p120 = scmp.eq.s32.totalorder %s14, 0
      %p121 = por %p119, %p120
      %p122 = scmp.ne.s32.totalorder %s111, %s114
      %p123 = scmp.eq.s32.totalorder %s19, 1
      %p124 = por %p122, %p123
      %p125 = scmp.ne.s32.totalorder %s114, %s115
      %p126 = scmp.eq.s32.totalorder %s19, 0
      %p127 = por %p125, %p126
      %p128 = scmp.ne.s32.totalorder %s114, %s115
      %p129 = scmp.eq.s32.totalorder %s20, 1
      %p130 = por %p128, %p129
      %p132 = scmp.ne.s32.totalorder %s115, %s131
      %p133 = scmp.eq.s32.totalorder %s20, 0
      %p134 = por %p132, %p133
      %p135 = scmp.le.s32.totalorder 1, %s14
      %p136 = scmp.lt.s32.totalorder %s14, 3
      %p137 = pnand %p135, %p136
      %p138 = pneg %p137
      // Predicated region
      $region9: #{tpu_custom_call.1} parent=5 // pred_check
        _
      $region10: #{tpu_custom_call.1} parent=5 // pred_check_branch
        %140 = sbr.rel (%p137) target = $region12
      $region11: #{tpu_custom_call.1} parent=5 // pred_region
        %s141 = ssub.s32 %s14, 1
        // Predicated region
        $region13: #{tpu_custom_call.1} parent=11 // pred_check
          %p142 = pneg %p52
        $region14: #{tpu_custom_call.1} parent=11 // pred_check_branch
          %144 = sbr.rel (%p142) target = $region16
        $region15: #{tpu_custom_call.1} parent=11 // pred_region
          %s145 = smul.u32 32, %s23
          %147 = vsyncadd [#allocation4], 0
          %s148 = smul.addr %s145, 2
          %s149 = smul.addr %s148, 8
          %s150 = scalar_lea.hbm %s0, %s149
          %s151 = sshll.u32 %s150, 4
          %s152 = int_to_ptr.hbm [resolvable:$true] %s151
          %s153 = sshll.u32 [#allocation3], 4
          %s154 = int_to_ptr.vmem [resolvable:$true] %s153
          %159 = dma.hbm_to_vmem [thread:$0]  %s152, 8192, %s154, [#allocation4], 256, 256, 16
        $region16: #{tpu_custom_call.1} parent=11 // pred_fallthru
          _
        // Predicated region
        $region17: #{tpu_custom_call.1} parent=11 // pred_check
          %p160 = pneg %p73
        $region18: #{tpu_custom_call.1} parent=11 // pred_check_branch
          %162 = sbr.rel (%p160) target = $region20
        $region19: #{tpu_custom_call.1} parent=11 // pred_region
          %164 = vsyncadd [#allocation7], 0
          %s166 = sshll.u32 %s1, 4
          %s167 = int_to_ptr.hbm [resolvable:$true] %s166
          %s168 = sshll.u32 [#allocation6], 4
          %s169 = int_to_ptr.vmem [resolvable:$true] %s168
          %171 = dma.hbm_to_vmem [thread:$0]  %s167, 32, %s169, [#allocation7]
        $region20: #{tpu_custom_call.1} parent=11 // pred_fallthru
          _
      $region12: #{tpu_custom_call.1} parent=5 // pred_fallthru
        _
      %p172 = scmp.lt.s32.totalorder %s14, 2
      // Predicated region
      $region21: #{tpu_custom_call.1} parent=5 // pred_check
        %p173 = pneg %p172
      $region22: #{tpu_custom_call.1} parent=5 // pred_check_branch
        %175 = sbr.rel (%p173) target = $region24
      $region23: #{tpu_custom_call.1} parent=5 // pred_region
        // Predicated region
        $region25: #{tpu_custom_call.1} parent=23 // pred_check
          %p176 = pneg %p93
        $region26: #{tpu_custom_call.1} parent=23 // pred_check_branch
          %178 = sbr.rel (%p176) target = $region28
        $region27: #{tpu_custom_call.1} parent=23 // pred_region
          %s179 = sand.u32 %s14, 1
          %s180 = scalar_lea.sflag [#allocation4], %s179
          %s181 = sand.u32 %s83, 1
          %s182 = smul.addr %s181, 384
          %s183 = scalar_lea.vmem [#allocation8], %s182
          %s184 = smul.u32 3, %s22
          %186 = vsyncadd %s180, 0
          %s187 = smul.addr %s184, 4
          %s188 = scalar_lea.hbm %s2, %s187
          %s189 = sshll.u32 %s188, 4
          %s190 = int_to_ptr.hbm [resolvable:$true] %s189
          %s191 = sshll.u32 %s183, 4
          %s192 = int_to_ptr.vmem [resolvable:$true] %s191
          %197 = dma.hbm_to_vmem [thread:$0]  %s190, 6144, %s192, %s180, 384, 192, 12
        $region28: #{tpu_custom_call.1} parent=23 // pred_fallthru
          _
      $region24: #{tpu_custom_call.1} parent=5 // pred_fallthru
        _
      %p198 = scmp.le.s32.totalorder 1, %s14
      %p199 = scmp.lt.s32.totalorder %s14, 3
      %p200 = pnand %p198, %p199
      %p201 = pneg %p200
      // Predicated region
      $region29: #{tpu_custom_call.1} parent=5 // pred_check
        _
      $region30: #{tpu_custom_call.1} parent=5 // pred_check_branch
        %203 = sbr.rel (%p200) target = $region32
      $region31: #{tpu_custom_call.1} parent=5 // pred_region
        %s204 = ssub.s32 %s14, 1
        // Predicated region
        $region33: #{tpu_custom_call.1} parent=31 // pred_check
          %p205 = pneg %p52
        $region34: #{tpu_custom_call.1} parent=31 // pred_check_branch
          %207 = sbr.rel (%p205) target = $region36
        $region35: #{tpu_custom_call.1} parent=31 // pred_region
          %209 = dma.done [#allocation4], 8192
        $region36: #{tpu_custom_call.1} parent=31 // pred_fallthru
          _
        // Predicated region
        $region37: #{tpu_custom_call.1} parent=31 // pred_check
          %p210 = pneg %p73
        $region38: #{tpu_custom_call.1} parent=31 // pred_check_branch
          %212 = sbr.rel (%p210) target = $region40
        $region39: #{tpu_custom_call.1} parent=31 // pred_region
          %214 = dma.done [#allocation7], 32
        $region40: #{tpu_custom_call.1} parent=31 // pred_fallthru
          _
        %s215 = sand.u32 %s19, 1
        %s216 = scalar_lea.sflag [#allocation4], %s215
        %s217 = sand.u32 %s86, 1
        %s218 = smul.addr %s217, 384
        %s219 = scalar_lea.vmem [#allocation8], %s218
        // Predicated region
        $region41: #{tpu_custom_call.1} parent=31 // pred_check
          %p220 = pneg %p99
        $region42: #{tpu_custom_call.1} parent=31 // pred_check_branch
          %222 = sbr.rel (%p220) target = $region44
        $region43: #{tpu_custom_call.1} parent=31 // pred_region
          %224 = dma.done %s216, 6144
        $region44: #{tpu_custom_call.1} parent=31 // pred_fallthru
          _
        %p225 = pneg %p52
        %p226 = pneg %p49
        %p227 = pneg %p73
        %p228 = pneg %p70
        %s229 = sand.u32 %s19, 1
        %s230 = scalar_lea.sflag [#allocation4], %s229
        %s231 = sand.u32 %s86, 1
        %s232 = smul.addr %s231, 384
        %s233 = scalar_lea.vmem [#allocation8], %s232
        %p234 = pneg %p99
        %p235 = pneg %p96
        %p236 = pneg %p127
        %p237 = pneg %p124
        %s238 = sand.u32 %s114, 1
        %s239 = scalar_lea.sflag [#allocation5], %s238
        %s240 = sand.u32 %s114, 1
        %s241 = smul.addr %s240, 384
        %s242 = scalar_lea.vmem [#allocation9], %s241
        %s243 = smul.u32 32, %s23
        %s244 = smul.u32 3, %s24
        %s245 = smul.u32 32, %s23
        %s246 = smul.u32 3, %s24
        %p247 = scmp.eq.s32.totalorder %s24, 0
        // Predicated region
        $region45: #{tpu_custom_call.1} parent=31 // pred_check
          %p248 = pneg %p247
        $region46: #{tpu_custom_call.1} parent=31 // pred_check_branch
          %250 = sbr.rel (%p248) target = $region48
        $region47: #{tpu_custom_call.1} parent=31 // pred_region
          %v251 = vld [vmem:[#allocation3] sm:$0xff]
          %v252 = vld [vmem:[#allocation3 + $0x8] sm:$0xff]
          %v253 = vld [vmem:[#allocation3 + $0x10] sm:$0xff]
          %v254 = vld [vmem:[#allocation3 + $0x18] sm:$0xff]
          %v255 = vld [vmem:[#allocation3 + $0x20] sm:$0xff]
          %v256 = vld [vmem:[#allocation3 + $0x28] sm:$0xff]
          %v257 = vld [vmem:[#allocation3 + $0x30] sm:$0xff]
          %v258 = vld [vmem:[#allocation3 + $0x38] sm:$0xff]
          %v259 = vld [vmem:[#allocation3 + $0x40] sm:$0xff]
          %v260 = vld [vmem:[#allocation3 + $0x48] sm:$0xff]
          %v261 = vld [vmem:[#allocation3 + $0x50] sm:$0xff]
          %v262 = vld [vmem:[#allocation3 + $0x58] sm:$0xff]
          %v263 = vld [vmem:[#allocation3 + $0x60] sm:$0xff]
          %v264 = vld [vmem:[#allocation3 + $0x68] sm:$0xff]
          %v265 = vld [vmem:[#allocation3 + $0x70] sm:$0xff]
          %v266 = vld [vmem:[#allocation3 + $0x78] sm:$0xff]
          %v267 = vld [vmem:[#allocation3 + $0x80] sm:$0xff]
          %v268 = vld [vmem:[#allocation3 + $0x88] sm:$0xff]
          %v269 = vld [vmem:[#allocation3 + $0x90] sm:$0xff]
          %v270 = vld [vmem:[#allocation3 + $0x98] sm:$0xff]
          %v271 = vld [vmem:[#allocation3 + $0xa0] sm:$0xff]
          %v272 = vld [vmem:[#allocation3 + $0xa8] sm:$0xff]
          %v273 = vld [vmem:[#allocation3 + $0xb0] sm:$0xff]
          %v274 = vld [vmem:[#allocation3 + $0xb8] sm:$0xff]
          %v275 = vld [vmem:[#allocation3 + $0xc0] sm:$0xff]
          %v276 = vld [vmem:[#allocation3 + $0xc8] sm:$0xff]
          %v277 = vld [vmem:[#allocation3 + $0xd0] sm:$0xff]
          %v278 = vld [vmem:[#allocation3 + $0xd8] sm:$0xff]
          %v279 = vld [vmem:[#allocation3 + $0xe0] sm:$0xff]
          %v280 = vld [vmem:[#allocation3 + $0xe8] sm:$0xff]
          %v281 = vld [vmem:[#allocation3 + $0xf0] sm:$0xff]
          %v282 = vld [vmem:[#allocation3 + $0xf8] sm:$0xff]
          %v283 = vld [vmem:[#allocation3 + $0x100] sm:$0xff]
          %v284 = vld [vmem:[#allocation3 + $0x108] sm:$0xff]
          %v285 = vld [vmem:[#allocation3 + $0x110] sm:$0xff]
          %v286 = vld [vmem:[#allocation3 + $0x118] sm:$0xff]
          %v287 = vld [vmem:[#allocation3 + $0x120] sm:$0xff]
          %v288 = vld [vmem:[#allocation3 + $0x128] sm:$0xff]
          %v289 = vld [vmem:[#allocation3 + $0x130] sm:$0xff]
          %v290 = vld [vmem:[#allocation3 + $0x138] sm:$0xff]
          %v291 = vld [vmem:[#allocation3 + $0x140] sm:$0xff]
          %v292 = vld [vmem:[#allocation3 + $0x148] sm:$0xff]
          %v293 = vld [vmem:[#allocation3 + $0x150] sm:$0xff]
          %v294 = vld [vmem:[#allocation3 + $0x158] sm:$0xff]
          %v295 = vld [vmem:[#allocation3 + $0x160] sm:$0xff]
          %v296 = vld [vmem:[#allocation3 + $0x168] sm:$0xff]
          %v297 = vld [vmem:[#allocation3 + $0x170] sm:$0xff]
          %v298 = vld [vmem:[#allocation3 + $0x178] sm:$0xff]
          %v299 = vld [vmem:[#allocation3 + $0x180] sm:$0xff]
          %v300 = vld [vmem:[#allocation3 + $0x188] sm:$0xff]
          %v301 = vld [vmem:[#allocation3 + $0x190] sm:$0xff]
          %v302 = vld [vmem:[#allocation3 + $0x198] sm:$0xff]
          %v303 = vld [vmem:[#allocation3 + $0x1a0] sm:$0xff]
          %v304 = vld [vmem:[#allocation3 + $0x1a8] sm:$0xff]
          %v305 = vld [vmem:[#allocation3 + $0x1b0] sm:$0xff]
          %v306 = vld [vmem:[#allocation3 + $0x1b8] sm:$0xff]
          %v307 = vld [vmem:[#allocation3 + $0x1c0] sm:$0xff]
          %v308 = vld [vmem:[#allocation3 + $0x1c8] sm:$0xff]
          %v309 = vld [vmem:[#allocation3 + $0x1d0] sm:$0xff]
          %v310 = vld [vmem:[#allocation3 + $0x1d8] sm:$0xff]
          %v311 = vld [vmem:[#allocation3 + $0x1e0] sm:$0xff]
          %v312 = vld [vmem:[#allocation3 + $0x1e8] sm:$0xff]
          %v313 = vld [vmem:[#allocation3 + $0x1f0] sm:$0xff]
          %v314 = vld [vmem:[#allocation3 + $0x1f8] sm:$0xff]
          %v315 = vmul.f32 %v251, %v251
          %v316 = vmul.f32 %v252, %v252
          %v317 = vmul.f32 %v253, %v253
          %v318 = vmul.f32 %v254, %v254
          %v319 = vmul.f32 %v255, %v255
          %v320 = vmul.f32 %v256, %v256
          %v321 = vmul.f32 %v257, %v257
          %v322 = vmul.f32 %v258, %v258
          %v323 = vmul.f32 %v259, %v259
          %v324 = vmul.f32 %v260, %v260
          %v325 = vmul.f32 %v261, %v261
          %v326 = vmul.f32 %v262, %v262
          %v327 = vmul.f32 %v263, %v263
          %v328 = vmul.f32 %v264, %v264
          %v329 = vmul.f32 %v265, %v265
          %v330 = vmul.f32 %v266, %v266
          %v331 = vmul.f32 %v267, %v267
          %v332 = vmul.f32 %v268, %v268
          %v333 = vmul.f32 %v269, %v269
          %v334 = vmul.f32 %v270, %v270
          %v335 = vmul.f32 %v271, %v271
          %v336 = vmul.f32 %v272, %v272
          %v337 = vmul.f32 %v273, %v273
          %v338 = vmul.f32 %v274, %v274
          %v339 = vmul.f32 %v275, %v275
          %v340 = vmul.f32 %v276, %v276
          %v341 = vmul.f32 %v277, %v277
          %v342 = vmul.f32 %v278, %v278
          %v343 = vmul.f32 %v279, %v279
          %v344 = vmul.f32 %v280, %v280
          %v345 = vmul.f32 %v281, %v281
          %v346 = vmul.f32 %v282, %v282
          %v347 = vmul.f32 %v283, %v283
          %v348 = vmul.f32 %v284, %v284
          %v349 = vmul.f32 %v285, %v285
          %v350 = vmul.f32 %v286, %v286
          %v351 = vmul.f32 %v287, %v287
          %v352 = vmul.f32 %v288, %v288
          %v353 = vmul.f32 %v289, %v289
          %v354 = vmul.f32 %v290, %v290
          %v355 = vmul.f32 %v291, %v291
          %v356 = vmul.f32 %v292, %v292
          %v357 = vmul.f32 %v293, %v293
          %v358 = vmul.f32 %v294, %v294
          %v359 = vmul.f32 %v295, %v295
          %v360 = vmul.f32 %v296, %v296
          %v361 = vmul.f32 %v297, %v297
          %v362 = vmul.f32 %v298, %v298
          %v363 = vmul.f32 %v299, %v299
          %v364 = vmul.f32 %v300, %v300
          %v365 = vmul.f32 %v301, %v301
          %v366 = vmul.f32 %v302, %v302
          %v367 = vmul.f32 %v303, %v303
          %v368 = vmul.f32 %v304, %v304
          %v369 = vmul.f32 %v305, %v305
          %v370 = vmul.f32 %v306, %v306
          %v371 = vmul.f32 %v307, %v307
          %v372 = vmul.f32 %v308, %v308
          %v373 = vmul.f32 %v309, %v309
          %v374 = vmul.f32 %v310, %v310
          %v375 = vmul.f32 %v311, %v311
          %v376 = vmul.f32 %v312, %v312
          %v377 = vmul.f32 %v313, %v313
          %v378 = vmul.f32 %v314, %v314
          %v379 = vadd.f32 %v315, %v316
          %380 = vadd.xlane.f32.xlu0 %v379
          %v381 = vpop.xlane.xlu0 %380
          %v382 = vadd.f32 %v317, %v318
          %383 = vadd.xlane.f32.xlu0 %v382
          %v384 = vpop.xlane.xlu0 %383
          %v385 = vadd.f32 %v319, %v320
          %386 = vadd.xlane.f32.xlu0 %v385
          %v387 = vpop.xlane.xlu0 %386
          %v388 = vadd.f32 %v321, %v322
          %389 = vadd.xlane.f32.xlu0 %v388
          %v390 = vpop.xlane.xlu0 %389
          %v391 = vadd.f32 %v323, %v324
          %392 = vadd.xlane.f32.xlu0 %v391
          %v393 = vpop.xlane.xlu0 %392
          %v394 = vadd.f32 %v325, %v326
          %395 = vadd.xlane.f32.xlu0 %v394
          %v396 = vpop.xlane.xlu0 %395
          %v397 = vadd.f32 %v327, %v328
          %398 = vadd.xlane.f32.xlu0 %v397
          %v399 = vpop.xlane.xlu0 %398
          %v400 = vadd.f32 %v329, %v330
          %401 = vadd.xlane.f32.xlu0 %v400
          %v402 = vpop.xlane.xlu0 %401
          %v403 = vadd.f32 %v331, %v332
          %404 = vadd.xlane.f32.xlu0 %v403
          %v405 = vpop.xlane.xlu0 %404
          %v406 = vadd.f32 %v333, %v334
          %407 = vadd.xlane.f32.xlu0 %v406
          %v408 = vpop.xlane.xlu0 %407
          %v409 = vadd.f32 %v335, %v336
          %410 = vadd.xlane.f32.xlu0 %v409
          %v411 = vpop.xlane.xlu0 %410
          %v412 = vadd.f32 %v337, %v338
          %413 = vadd.xlane.f32.xlu0 %v412
          %v414 = vpop.xlane.xlu0 %413
          %v415 = vadd.f32 %v339, %v340
          %416 = vadd.xlane.f32.xlu0 %v415
          %v417 = vpop.xlane.xlu0 %416
          %v418 = vadd.f32 %v341, %v342
          %419 = vadd.xlane.f32.xlu0 %v418
          %v420 = vpop.xlane.xlu0 %419
          %v421 = vadd.f32 %v343, %v344
          %422 = vadd.xlane.f32.xlu0 %v421
          %v423 = vpop.xlane.xlu0 %422
          %v424 = vadd.f32 %v345, %v346
          %425 = vadd.xlane.f32.xlu0 %v424
          %v426 = vpop.xlane.xlu0 %425
          %v427 = vadd.f32 %v347, %v348
          %428 = vadd.xlane.f32.xlu0 %v427
          %v429 = vpop.xlane.xlu0 %428
          %v430 = vadd.f32 %v349, %v350
          %431 = vadd.xlane.f32.xlu0 %v430
          %v432 = vpop.xlane.xlu0 %431
          %v433 = vadd.f32 %v351, %v352
          %434 = vadd.xlane.f32.xlu0 %v433
          %v435 = vpop.xlane.xlu0 %434
          %v436 = vadd.f32 %v353, %v354
          %437 = vadd.xlane.f32.xlu0 %v436
          %v438 = vpop.xlane.xlu0 %437
          %v439 = vadd.f32 %v355, %v356
          %440 = vadd.xlane.f32.xlu0 %v439
          %v441 = vpop.xlane.xlu0 %440
          %v442 = vadd.f32 %v357, %v358
          %443 = vadd.xlane.f32.xlu0 %v442
          %v444 = vpop.xlane.xlu0 %443
          %v445 = vadd.f32 %v359, %v360
          %446 = vadd.xlane.f32.xlu0 %v445
          %v447 = vpop.xlane.xlu0 %446
          %v448 = vadd.f32 %v361, %v362
          %449 = vadd.xlane.f32.xlu0 %v448
          %v450 = vpop.xlane.xlu0 %449
          %v451 = vadd.f32 %v363, %v364
          %452 = vadd.xlane.f32.xlu0 %v451
          %v453 = vpop.xlane.xlu0 %452
          %v454 = vadd.f32 %v365, %v366
          %455 = vadd.xlane.f32.xlu0 %v454
          %v456 = vpop.xlane.xlu0 %455
          %v457 = vadd.f32 %v367, %v368
          %458 = vadd.xlane.f32.xlu0 %v457
          %v459 = vpop.xlane.xlu0 %458
          %v460 = vadd.f32 %v369, %v370
          %461 = vadd.xlane.f32.xlu0 %v460
          %v462 = vpop.xlane.xlu0 %461
          %v463 = vadd.f32 %v371, %v372
          %464 = vadd.xlane.f32.xlu0 %v463
          %v465 = vpop.xlane.xlu0 %464
          %v466 = vadd.f32 %v373, %v374
          %467 = vadd.xlane.f32.xlu0 %v466
          %v468 = vpop.xlane.xlu0 %467
          %v469 = vadd.f32 %v375, %v376
          %470 = vadd.xlane.f32.xlu0 %v469
          %v471 = vpop.xlane.xlu0 %470
          %v472 = vadd.f32 %v377, %v378
          %473 = vadd.xlane.f32.xlu0 %v472
          %v474 = vpop.xlane.xlu0 %473
          %v475 = vrcp.pop 256.0
          %v476 = vmul.f32 256.0, %v475
          %v477 = vsub.f32 1.0, %v476
          %v478 = vmul.f32 %v475, %v477
          %v479 = vadd.f32 %v475, %v478
          %vm480 = vweird.f32 %v475
          %v481 = vsel %vm480, %v475, %v479
          %v482 = vmul.f32 %v381, %v481
          %v483 = vmul.f32 %v384, %v481
          %v484 = vmul.f32 %v387, %v481
          %v485 = vmul.f32 %v390, %v481
          %v486 = vmul.f32 %v393, %v481
          %v487 = vmul.f32 %v396, %v481
          %v488 = vmul.f32 %v399, %v481
          %v489 = vmul.f32 %v402, %v481
          %v490 = vmul.f32 %v405, %v481
          %v491 = vmul.f32 %v408, %v481
          %v492 = vmul.f32 %v411, %v481
          %v493 = vmul.f32 %v414, %v481
          %v494 = vmul.f32 %v417, %v481
          %v495 = vmul.f32 %v420, %v481
          %v496 = vmul.f32 %v423, %v481
          %v497 = vmul.f32 %v426, %v481
          %v498 = vmul.f32 %v429, %v481
          %v499 = vmul.f32 %v432, %v481
          %v500 = vmul.f32 %v435, %v481
          %v501 = vmul.f32 %v438, %v481
          %v502 = vmul.f32 %v441, %v481
          %v503 = vmul.f32 %v444, %v481
          %v504 = vmul.f32 %v447, %v481
          %v505 = vmul.f32 %v450, %v481
          %v506 = vmul.f32 %v453, %v481
          %v507 = vmul.f32 %v456, %v481
          %v508 = vmul.f32 %v459, %v481
          %v509 = vmul.f32 %v462, %v481
          %v510 = vmul.f32 %v465, %v481
          %v511 = vmul.f32 %v468, %v481
          %v512 = vmul.f32 %v471, %v481
          %v513 = vmul.f32 %v474, %v481
          %v514 = vadd.f32 %v482, 1.1920929e-07
          %v515 = vadd.f32 %v483, 1.1920929e-07
          %v516 = vadd.f32 %v484, 1.1920929e-07
          %v517 = vadd.f32 %v485, 1.1920929e-07
          %v518 = vadd.f32 %v486, 1.1920929e-07
          %v519 = vadd.f32 %v487, 1.1920929e-07
          %v520 = vadd.f32 %v488, 1.1920929e-07
          %v521 = vadd.f32 %v489, 1.1920929e-07
          %v522 = vadd.f32 %v490, 1.1920929e-07
          %v523 = vadd.f32 %v491, 1.1920929e-07
          %v524 = vadd.f32 %v492, 1.1920929e-07
          %v525 = vadd.f32 %v493, 1.1920929e-07
          %v526 = vadd.f32 %v494, 1.1920929e-07
          %v527 = vadd.f32 %v495, 1.1920929e-07
          %v528 = vadd.f32 %v496, 1.1920929e-07
          %v529 = vadd.f32 %v497, 1.1920929e-07
          %v530 = vadd.f32 %v498, 1.1920929e-07
          %v531 = vadd.f32 %v499, 1.1920929e-07
          %v532 = vadd.f32 %v500, 1.1920929e-07
          %v533 = vadd.f32 %v501, 1.1920929e-07
          %v534 = vadd.f32 %v502, 1.1920929e-07
          %v535 = vadd.f32 %v503, 1.1920929e-07
          %v536 = vadd.f32 %v504, 1.1920929e-07
          %v537 = vadd.f32 %v505, 1.1920929e-07
          %v538 = vadd.f32 %v506, 1.1920929e-07
          %v539 = vadd.f32 %v507, 1.1920929e-07
          %v540 = vadd.f32 %v508, 1.1920929e-07
          %v541 = vadd.f32 %v509, 1.1920929e-07
          %v542 = vadd.f32 %v510, 1.1920929e-07
          %v543 = vadd.f32 %v511, 1.1920929e-07
          %v544 = vadd.f32 %v512, 1.1920929e-07
          %v545 = vadd.f32 %v513, 1.1920929e-07
          %v546 = vrsqrt.pop %v514
          %v547 = vmul.f32 %v546, %v514
          %v548 = vmul.f32 %v547, %v546
          %v549 = vmul.f32 0.5, %v548
          %v550 = vsub.f32 1.5, %v549
          %v551 = vmul.f32 %v546, %v550
          %vm552 = vweird.f32 %v514
          %vm553 = vweird.f32 %v546
          %vm554 = vmor %vm552, %vm553
          %v555 = vsel %vm554, %v546, %v551
          %v556 = vrsqrt.pop %v515
          %v557 = vmul.f32 %v556, %v515
          %v558 = vmul.f32 %v557, %v556
          %v559 = vmul.f32 0.5, %v558
          %v560 = vsub.f32 1.5, %v559
          %v561 = vmul.f32 %v556, %v560
          %vm562 = vweird.f32 %v515
          %vm563 = vweird.f32 %v556
          %vm564 = vmor %vm562, %vm563
          %v565 = vsel %vm564, %v556, %v561
          %v566 = vrsqrt.pop %v516
          %v567 = vmul.f32 %v566, %v516
          %v568 = vmul.f32 %v567, %v566
          %v569 = vmul.f32 0.5, %v568
          %v570 = vsub.f32 1.5, %v569
          %v571 = vmul.f32 %v566, %v570
          %vm572 = vweird.f32 %v516
          %vm573 = vweird.f32 %v566
          %vm574 = vmor %vm572, %vm573
          %v575 = vsel %vm574, %v566, %v571
          %v576 = vrsqrt.pop %v517
          %v577 = vmul.f32 %v576, %v517
          %v578 = vmul.f32 %v577, %v576
          %v579 = vmul.f32 0.5, %v578
          %v580 = vsub.f32 1.5, %v579
          %v581 = vmul.f32 %v576, %v580
          %vm582 = vweird.f32 %v517
          %vm583 = vweird.f32 %v576
          %vm584 = vmor %vm582, %vm583
          %v585 = vsel %vm584, %v576, %v581
          %v586 = vrsqrt.pop %v518
          %v587 = vmul.f32 %v586, %v518
          %v588 = vmul.f32 %v587, %v586
          %v589 = vmul.f32 0.5, %v588
          %v590 = vsub.f32 1.5, %v589
          %v591 = vmul.f32 %v586, %v590
          %vm592 = vweird.f32 %v518
          %vm593 = vweird.f32 %v586
          %vm594 = vmor %vm592, %vm593
          %v595 = vsel %vm594, %v586, %v591
          %v596 = vrsqrt.pop %v519
          %v597 = vmul.f32 %v596, %v519
          %v598 = vmul.f32 %v597, %v596
          %v599 = vmul.f32 0.5, %v598
          %v600 = vsub.f32 1.5, %v599
          %v601 = vmul.f32 %v596, %v600
          %vm602 = vweird.f32 %v519
          %vm603 = vweird.f32 %v596
          %vm604 = vmor %vm602, %vm603
          %v605 = vsel %vm604, %v596, %v601
          %v606 = vrsqrt.pop %v520
          %v607 = vmul.f32 %v606, %v520
          %v608 = vmul.f32 %v607, %v606
          %v609 = vmul.f32 0.5, %v608
          %v610 = vsub.f32 1.5, %v609
          %v611 = vmul.f32 %v606, %v610
          %vm612 = vweird.f32 %v520
          %vm613 = vweird.f32 %v606
          %vm614 = vmor %vm612, %vm613
          %v615 = vsel %vm614, %v606, %v611
          %v616 = vrsqrt.pop %v521
          %v617 = vmul.f32 %v616, %v521
          %v618 = vmul.f32 %v617, %v616
          %v619 = vmul.f32 0.5, %v618
          %v620 = vsub.f32 1.5, %v619
          %v621 = vmul.f32 %v616, %v620
          %vm622 = vweird.f32 %v521
          %vm623 = vweird.f32 %v616
          %vm624 = vmor %vm622, %vm623
          %v625 = vsel %vm624, %v616, %v621
          %v626 = vrsqrt.pop %v522
          %v627 = vmul.f32 %v626, %v522
          %v628 = vmul.f32 %v627, %v626
          %v629 = vmul.f32 0.5, %v628
          %v630 = vsub.f32 1.5, %v629
          %v631 = vmul.f32 %v626, %v630
          %vm632 = vweird.f32 %v522
          %vm633 = vweird.f32 %v626
          %vm634 = vmor %vm632, %vm633
          %v635 = vsel %vm634, %v626, %v631
          %v636 = vrsqrt.pop %v523
          %v637 = vmul.f32 %v636, %v523
          %v638 = vmul.f32 %v637, %v636
          %v639 = vmul.f32 0.5, %v638
          %v640 = vsub.f32 1.5, %v639
          %v641 = vmul.f32 %v636, %v640
          %vm642 = vweird.f32 %v523
          %vm643 = vweird.f32 %v636
          %vm644 = vmor %vm642, %vm643
          %v645 = vsel %vm644, %v636, %v641
          %v646 = vrsqrt.pop %v524
          %v647 = vmul.f32 %v646, %v524
          %v648 = vmul.f32 %v647, %v646
          %v649 = vmul.f32 0.5, %v648
          %v650 = vsub.f32 1.5, %v649
          %v651 = vmul.f32 %v646, %v650
          %vm652 = vweird.f32 %v524
          %vm653 = vweird.f32 %v646
          %vm654 = vmor %vm652, %vm653
          %v655 = vsel %vm654, %v646, %v651
          %v656 = vrsqrt.pop %v525
          %v657 = vmul.f32 %v656, %v525
          %v658 = vmul.f32 %v657, %v656
          %v659 = vmul.f32 0.5, %v658
          %v660 = vsub.f32 1.5, %v659
          %v661 = vmul.f32 %v656, %v660
          %vm662 = vweird.f32 %v525
          %vm663 = vweird.f32 %v656
          %vm664 = vmor %vm662, %vm663
          %v665 = vsel %vm664, %v656, %v661
          %v666 = vrsqrt.pop %v526
          %v667 = vmul.f32 %v666, %v526
          %v668 = vmul.f32 %v667, %v666
          %v669 = vmul.f32 0.5, %v668
          %v670 = vsub.f32 1.5, %v669
          %v671 = vmul.f32 %v666, %v670
          %vm672 = vweird.f32 %v526
          %vm673 = vweird.f32 %v666
          %vm674 = vmor %vm672, %vm673
          %v675 = vsel %vm674, %v666, %v671
          %v676 = vrsqrt.pop %v527
          %v677 = vmul.f32 %v676, %v527
          %v678 = vmul.f32 %v677, %v676
          %v679 = vmul.f32 0.5, %v678
          %v680 = vsub.f32 1.5, %v679
          %v681 = vmul.f32 %v676, %v680
          %vm682 = vweird.f32 %v527
          %vm683 = vweird.f32 %v676
          %vm684 = vmor %vm682, %vm683
          %v685 = vsel %vm684, %v676, %v681
          %v686 = vrsqrt.pop %v528
          %v687 = vmul.f32 %v686, %v528
          %v688 = vmul.f32 %v687, %v686
          %v689 = vmul.f32 0.5, %v688
          %v690 = vsub.f32 1.5, %v689
          %v691 = vmul.f32 %v686, %v690
          %vm692 = vweird.f32 %v528
          %vm693 = vweird.f32 %v686
          %vm694 = vmor %vm692, %vm693
          %v695 = vsel %vm694, %v686, %v691
          %v696 = vrsqrt.pop %v529
          %v697 = vmul.f32 %v696, %v529
          %v698 = vmul.f32 %v697, %v696
          %v699 = vmul.f32 0.5, %v698
          %v700 = vsub.f32 1.5, %v699
          %v701 = vmul.f32 %v696, %v700
          %vm702 = vweird.f32 %v529
          %vm703 = vweird.f32 %v696
          %vm704 = vmor %vm702, %vm703
          %v705 = vsel %vm704, %v696, %v701
          %v706 = vrsqrt.pop %v530
          %v707 = vmul.f32 %v706, %v530
          %v708 = vmul.f32 %v707, %v706
          %v709 = vmul.f32 0.5, %v708
          %v710 = vsub.f32 1.5, %v709
          %v711 = vmul.f32 %v706, %v710
          %vm712 = vweird.f32 %v530
          %vm713 = vweird.f32 %v706
          %vm714 = vmor %vm712, %vm713
          %v715 = vsel %vm714, %v706, %v711
          %v716 = vrsqrt.pop %v531
          %v717 = vmul.f32 %v716, %v531
          %v718 = vmul.f32 %v717, %v716
          %v719 = vmul.f32 0.5, %v718
          %v720 = vsub.f32 1.5, %v719
          %v721 = vmul.f32 %v716, %v720
          %vm722 = vweird.f32 %v531
          %vm723 = vweird.f32 %v716
          %vm724 = vmor %vm722, %vm723
          %v725 = vsel %vm724, %v716, %v721
          %v726 = vrsqrt.pop %v532
          %v727 = vmul.f32 %v726, %v532
          %v728 = vmul.f32 %v727, %v726
          %v729 = vmul.f32 0.5, %v728
          %v730 = vsub.f32 1.5, %v729
          %v731 = vmul.f32 %v726, %v730
          %vm732 = vweird.f32 %v532
          %vm733 = vweird.f32 %v726
          %vm734 = vmor %vm732, %vm733
          %v735 = vsel %vm734, %v726, %v731
          %v736 = vrsqrt.pop %v533
          %v737 = vmul.f32 %v736, %v533
          %v738 = vmul.f32 %v737, %v736
          %v739 = vmul.f32 0.5, %v738
          %v740 = vsub.f32 1.5, %v739
          %v741 = vmul.f32 %v736, %v740
          %vm742 = vweird.f32 %v533
          %vm743 = vweird.f32 %v736
          %vm744 = vmor %vm742, %vm743
          %v745 = vsel %vm744, %v736, %v741
          %v746 = vrsqrt.pop %v534
          %v747 = vmul.f32 %v746, %v534
          %v748 = vmul.f32 %v747, %v746
          %v749 = vmul.f32 0.5, %v748
          %v750 = vsub.f32 1.5, %v749
          %v751 = vmul.f32 %v746, %v750
          %vm752 = vweird.f32 %v534
          %vm753 = vweird.f32 %v746
          %vm754 = vmor %vm752, %vm753
          %v755 = vsel %vm754, %v746, %v751
          %v756 = vrsqrt.pop %v535
          %v757 = vmul.f32 %v756, %v535
          %v758 = vmul.f32 %v757, %v756
          %v759 = vmul.f32 0.5, %v758
          %v760 = vsub.f32 1.5, %v759
          %v761 = vmul.f32 %v756, %v760
          %vm762 = vweird.f32 %v535
          %vm763 = vweird.f32 %v756
          %vm764 = vmor %vm762, %vm763
          %v765 = vsel %vm764, %v756, %v761
          %v766 = vrsqrt.pop %v536
          %v767 = vmul.f32 %v766, %v536
          %v768 = vmul.f32 %v767, %v766
          %v769 = vmul.f32 0.5, %v768
          %v770 = vsub.f32 1.5, %v769
          %v771 = vmul.f32 %v766, %v770
          %vm772 = vweird.f32 %v536
          %vm773 = vweird.f32 %v766
          %vm774 = vmor %vm772, %vm773
          %v775 = vsel %vm774, %v766, %v771
          %v776 = vrsqrt.pop %v537
          %v777 = vmul.f32 %v776, %v537
          %v778 = vmul.f32 %v777, %v776
          %v779 = vmul.f32 0.5, %v778
          %v780 = vsub.f32 1.5, %v779
          %v781 = vmul.f32 %v776, %v780
          %vm782 = vweird.f32 %v537
          %vm783 = vweird.f32 %v776
          %vm784 = vmor %vm782, %vm783
          %v785 = vsel %vm784, %v776, %v781
          %v786 = vrsqrt.pop %v538
          %v787 = vmul.f32 %v786, %v538
          %v788 = vmul.f32 %v787, %v786
          %v789 = vmul.f32 0.5, %v788
          %v790 = vsub.f32 1.5, %v789
          %v791 = vmul.f32 %v786, %v790
          %vm792 = vweird.f32 %v538
          %vm793 = vweird.f32 %v786
          %vm794 = vmor %vm792, %vm793
          %v795 = vsel %vm794, %v786, %v791
          %v796 = vrsqrt.pop %v539
          %v797 = vmul.f32 %v796, %v539
          %v798 = vmul.f32 %v797, %v796
          %v799 = vmul.f32 0.5, %v798
          %v800 = vsub.f32 1.5, %v799
          %v801 = vmul.f32 %v796, %v800
          %vm802 = vweird.f32 %v539
          %vm803 = vweird.f32 %v796
          %vm804 = vmor %vm802, %vm803
          %v805 = vsel %vm804, %v796, %v801
          %v806 = vrsqrt.pop %v540
          %v807 = vmul.f32 %v806, %v540
          %v808 = vmul.f32 %v807, %v806
          %v809 = vmul.f32 0.5, %v808
          %v810 = vsub.f32 1.5, %v809
          %v811 = vmul.f32 %v806, %v810
          %vm812 = vweird.f32 %v540
          %vm813 = vweird.f32 %v806
          %vm814 = vmor %vm812, %vm813
          %v815 = vsel %vm814, %v806, %v811
          %v816 = vrsqrt.pop %v541
          %v817 = vmul.f32 %v816, %v541
          %v818 = vmul.f32 %v817, %v816
          %v819 = vmul.f32 0.5, %v818
          %v820 = vsub.f32 1.5, %v819
          %v821 = vmul.f32 %v816, %v820
          %vm822 = vweird.f32 %v541
          %vm823 = vweird.f32 %v816
          %vm824 = vmor %vm822, %vm823
          %v825 = vsel %vm824, %v816, %v821
          %v826 = vrsqrt.pop %v542
          %v827 = vmul.f32 %v826, %v542
          %v828 = vmul.f32 %v827, %v826
          %v829 = vmul.f32 0.5, %v828
          %v830 = vsub.f32 1.5, %v829
          %v831 = vmul.f32 %v826, %v830
          %vm832 = vweird.f32 %v542
          %vm833 = vweird.f32 %v826
          %vm834 = vmor %vm832, %vm833
          %v835 = vsel %vm834, %v826, %v831
          %v836 = vrsqrt.pop %v543
          %v837 = vmul.f32 %v836, %v543
          %v838 = vmul.f32 %v837, %v836
          %v839 = vmul.f32 0.5, %v838
          %v840 = vsub.f32 1.5, %v839
          %v841 = vmul.f32 %v836, %v840
          %vm842 = vweird.f32 %v543
          %vm843 = vweird.f32 %v836
          %vm844 = vmor %vm842, %vm843
          %v845 = vsel %vm844, %v836, %v841
          %v846 = vrsqrt.pop %v544
          %v847 = vmul.f32 %v846, %v544
          %v848 = vmul.f32 %v847, %v846
          %v849 = vmul.f32 0.5, %v848
          %v850 = vsub.f32 1.5, %v849
          %v851 = vmul.f32 %v846, %v850
          %vm852 = vweird.f32 %v544
          %vm853 = vweird.f32 %v846
          %vm854 = vmor %vm852, %vm853
          %v855 = vsel %vm854, %v846, %v851
          %v856 = vrsqrt.pop %v545
          %v857 = vmul.f32 %v856, %v545
          %v858 = vmul.f32 %v857, %v856
          %v859 = vmul.f32 0.5, %v858
          %v860 = vsub.f32 1.5, %v859
          %v861 = vmul.f32 %v856, %v860
          %vm862 = vweird.f32 %v545
          %vm863 = vweird.f32 %v856
          %vm864 = vmor %vm862, %vm863
          %v865 = vsel %vm864, %v856, %v861
          %v866 = vmul.f32 %v251, %v555
          %v867 = vmul.f32 %v252, %v555
          %v868 = vmul.f32 %v253, %v565
          %v869 = vmul.f32 %v254, %v565
          %v870 = vmul.f32 %v255, %v575
          %v871 = vmul.f32 %v256, %v575
          %v872 = vmul.f32 %v257, %v585
          %v873 = vmul.f32 %v258, %v585
          %v874 = vmul.f32 %v259, %v595
          %v875 = vmul.f32 %v260, %v595
          %v876 = vmul.f32 %v261, %v605
          %v877 = vmul.f32 %v262, %v605
          %v878 = vmul.f32 %v263, %v615
          %v879 = vmul.f32 %v264, %v615
          %v880 = vmul.f32 %v265, %v625
          %v881 = vmul.f32 %v266, %v625
          %v882 = vmul.f32 %v267, %v635
          %v883 = vmul.f32 %v268, %v635
          %v884 = vmul.f32 %v269, %v645
          %v885 = vmul.f32 %v270, %v645
          %v886 = vmul.f32 %v271, %v655
          %v887 = vmul.f32 %v272, %v655
          %v888 = vmul.f32 %v273, %v665
          %v889 = vmul.f32 %v274, %v665
          %v890 = vmul.f32 %v275, %v675
          %v891 = vmul.f32 %v276, %v675
          %v892 = vmul.f32 %v277, %v685
          %v893 = vmul.f32 %v278, %v685
          %v894 = vmul.f32 %v279, %v695
          %v895 = vmul.f32 %v280, %v695
          %v896 = vmul.f32 %v281, %v705
          %v897 = vmul.f32 %v282, %v705
          %v898 = vmul.f32 %v283, %v715
          %v899 = vmul.f32 %v284, %v715
          %v900 = vmul.f32 %v285, %v725
          %v901 = vmul.f32 %v286, %v725
          %v902 = vmul.f32 %v287, %v735
          %v903 = vmul.f32 %v288, %v735
          %v904 = vmul.f32 %v289, %v745
          %v905 = vmul.f32 %v290, %v745
          %v906 = vmul.f32 %v291, %v755
          %v907 = vmul.f32 %v292, %v755
          %v908 = vmul.f32 %v293, %v765
          %v909 = vmul.f32 %v294, %v765
          %v910 = vmul.f32 %v295, %v775
          %v911 = vmul.f32 %v296, %v775
          %v912 = vmul.f32 %v297, %v785
          %v913 = vmul.f32 %v298, %v785
          %v914 = vmul.f32 %v299, %v795
          %v915 = vmul.f32 %v300, %v795
          %v916 = vmul.f32 %v301, %v805
          %v917 = vmul.f32 %v302, %v805
          %v918 = vmul.f32 %v303, %v815
          %v919 = vmul.f32 %v304, %v815
          %v920 = vmul.f32 %v305, %v825
          %v921 = vmul.f32 %v306, %v825
          %v922 = vmul.f32 %v307, %v835
          %v923 = vmul.f32 %v308, %v835
          %v924 = vmul.f32 %v309, %v845
          %v925 = vmul.f32 %v310, %v845
          %v926 = vmul.f32 %v311, %v855
          %v927 = vmul.f32 %v312, %v855
          %v928 = vmul.f32 %v313, %v865
          %v929 = vmul.f32 %v314, %v865
          %v930 = vld [vmem:[#allocation6] sm:$0x3]
          %v932 = vperm.slane %v930, 0
          %v933 = vperm.slane %v930, 1
          %v936 = vmul.f32 %v866, %v932
          %v937 = vmul.f32 %v867, %v933
          %v938 = vmul.f32 %v868, %v932
          %v939 = vmul.f32 %v869, %v933
          %v940 = vmul.f32 %v870, %v932
          %v941 = vmul.f32 %v871, %v933
          %v942 = vmul.f32 %v872, %v932
          %v943 = vmul.f32 %v873, %v933
          %v944 = vmul.f32 %v874, %v932
          %v945 = vmul.f32 %v875, %v933
          %v946 = vmul.f32 %v876, %v932
          %v947 = vmul.f32 %v877, %v933
          %v948 = vmul.f32 %v878, %v932
          %v949 = vmul.f32 %v879, %v933
          %v950 = vmul.f32 %v880, %v932
          %v951 = vmul.f32 %v881, %v933
          %v952 = vmul.f32 %v882, %v932
          %v953 = vmul.f32 %v883, %v933
          %v954 = vmul.f32 %v884, %v932
          %v955 = vmul.f32 %v885, %v933
          %v956 = vmul.f32 %v886, %v932
          %v957 = vmul.f32 %v887, %v933
          %v958 = vmul.f32 %v888, %v932
          %v959 = vmul.f32 %v889, %v933
          %v960 = vmul.f32 %v890, %v932
          %v961 = vmul.f32 %v891, %v933
          %v962 = vmul.f32 %v892, %v932
          %v963 = vmul.f32 %v893, %v933
          %v964 = vmul.f32 %v894, %v932
          %v965 = vmul.f32 %v895, %v933
          %v966 = vmul.f32 %v896, %v932
          %v967 = vmul.f32 %v897, %v933
          %v968 = vmul.f32 %v898, %v932
          %v969 = vmul.f32 %v899, %v933
          %v970 = vmul.f32 %v900, %v932
          %v971 = vmul.f32 %v901, %v933
          %v972 = vmul.f32 %v902, %v932
          %v973 = vmul.f32 %v903, %v933
          %v974 = vmul.f32 %v904, %v932
          %v975 = vmul.f32 %v905, %v933
          %v976 = vmul.f32 %v906, %v932
          %v977 = vmul.f32 %v907, %v933
          %v978 = vmul.f32 %v908, %v932
          %v979 = vmul.f32 %v909, %v933
          %v980 = vmul.f32 %v910, %v932
          %v981 = vmul.f32 %v911, %v933
          %v982 = vmul.f32 %v912, %v932
          %v983 = vmul.f32 %v913, %v933
          %v984 = vmul.f32 %v914, %v932
          %v985 = vmul.f32 %v915, %v933
          %v986 = vmul.f32 %v916, %v932
          %v987 = vmul.f32 %v917, %v933
          %v988 = vmul.f32 %v918, %v932
          %v989 = vmul.f32 %v919, %v933
          %v990 = vmul.f32 %v920, %v932
          %v991 = vmul.f32 %v921, %v933
          %v992 = vmul.f32 %v922, %v932
          %v993 = vmul.f32 %v923, %v933
          %v994 = vmul.f32 %v924, %v932
          %v995 = vmul.f32 %v925, %v933
          %v996 = vmul.f32 %v926, %v932
          %v997 = vmul.f32 %v927, %v933
          %v998 = vmul.f32 %v928, %v932
          %v999 = vmul.f32 %v929, %v933
          %v1000 = vpack.c.bf16 %v937, %v936
          %v1001 = vpack.c.bf16 %v939, %v938
          %v1002 = vpack.c.bf16 %v941, %v940
          %v1003 = vpack.c.bf16 %v943, %v942
          %v1004 = vpack.c.bf16 %v945, %v944
          %v1005 = vpack.c.bf16 %v947, %v946
          %v1006 = vpack.c.bf16 %v949, %v948
          %v1007 = vpack.c.bf16 %v951, %v950
          %v1008 = vpack.c.bf16 %v953, %v952
          %v1009 = vpack.c.bf16 %v955, %v954
          %v1010 = vpack.c.bf16 %v957, %v956
          %v1011 = vpack.c.bf16 %v959, %v958
          %v1012 = vpack.c.bf16 %v961, %v960
          %v1013 = vpack.c.bf16 %v963, %v962
          %v1014 = vpack.c.bf16 %v965, %v964
          %v1015 = vpack.c.bf16 %v967, %v966
          %v1016 = vpack.c.bf16 %v969, %v968
          %v1017 = vpack.c.bf16 %v971, %v970
          %v1018 = vpack.c.bf16 %v973, %v972
          %v1019 = vpack.c.bf16 %v975, %v974
          %v1020 = vpack.c.bf16 %v977, %v976
          %v1021 = vpack.c.bf16 %v979, %v978
          %v1022 = vpack.c.bf16 %v981, %v980
          %v1023 = vpack.c.bf16 %v983, %v982
          %v1024 = vpack.c.bf16 %v985, %v984
          %v1025 = vpack.c.bf16 %v987, %v986
          %v1026 = vpack.c.bf16 %v989, %v988
          %v1027 = vpack.c.bf16 %v991, %v990
          %v1028 = vpack.c.bf16 %v993, %v992
          %v1029 = vpack.c.bf16 %v995, %v994
          %v1030 = vpack.c.bf16 %v997, %v996
          %v1031 = vpack.c.bf16 %v999, %v998
          %1032 = vst [vmem:[#allocation2] sm:$0xff] %v1000
          %1033 = vst [vmem:[#allocation2 + $0x8] sm:$0xff] %v1001
          %1034 = vst [vmem:[#allocation2 + $0x10] sm:$0xff] %v1002
          %1035 = vst [vmem:[#allocation2 + $0x18] sm:$0xff] %v1003
          %1036 = vst [vmem:[#allocation2 + $0x20] sm:$0xff] %v1004
          %1037 = vst [vmem:[#allocation2 + $0x28] sm:$0xff] %v1005
          %1038 = vst [vmem:[#allocation2 + $0x30] sm:$0xff] %v1006
          %1039 = vst [vmem:[#allocation2 + $0x38] sm:$0xff] %v1007
          %1040 = vst [vmem:[#allocation2 + $0x40] sm:$0xff] %v1008
          %1041 = vst [vmem:[#allocation2 + $0x48] sm:$0xff] %v1009
          %1042 = vst [vmem:[#allocation2 + $0x50] sm:$0xff] %v1010
          %1043 = vst [vmem:[#allocation2 + $0x58] sm:$0xff] %v1011
          %1044 = vst [vmem:[#allocation2 + $0x60] sm:$0xff] %v1012
          %1045 = vst [vmem:[#allocation2 + $0x68] sm:$0xff] %v1013
          %1046 = vst [vmem:[#allocation2 + $0x70] sm:$0xff] %v1014
          %1047 = vst [vmem:[#allocation2 + $0x78] sm:$0xff] %v1015
          %1048 = vst [vmem:[#allocation2 + $0x80] sm:$0xff] %v1016
          %1049 = vst [vmem:[#allocation2 + $0x88] sm:$0xff] %v1017
          %1050 = vst [vmem:[#allocation2 + $0x90] sm:$0xff] %v1018
          %1051 = vst [vmem:[#allocation2 + $0x98] sm:$0xff] %v1019
          %1052 = vst [vmem:[#allocation2 + $0xa0] sm:$0xff] %v1020
          %1053 = vst [vmem:[#allocation2 + $0xa8] sm:$0xff] %v1021
          %1054 = vst [vmem:[#allocation2 + $0xb0] sm:$0xff] %v1022
          %1055 = vst [vmem:[#allocation2 + $0xb8] sm:$0xff] %v1023
          %1056 = vst [vmem:[#allocation2 + $0xc0] sm:$0xff] %v1024
          %1057 = vst [vmem:[#allocation2 + $0xc8] sm:$0xff] %v1025
          %1058 = vst [vmem:[#allocation2 + $0xd0] sm:$0xff] %v1026
          %1059 = vst [vmem:[#allocation2 + $0xd8] sm:$0xff] %v1027
          %1060 = vst [vmem:[#allocation2 + $0xe0] sm:$0xff] %v1028
          %1061 = vst [vmem:[#allocation2 + $0xe8] sm:$0xff] %v1029
          %1062 = vst [vmem:[#allocation2 + $0xf0] sm:$0xff] %v1030
          %1063 = vst [vmem:[#allocation2 + $0xf8] sm:$0xff] %v1031
        $region48: #{tpu_custom_call.1} parent=31 // pred_fallthru
          _
        %v1064 = vld [vmem:[#allocation2] sm:$0xff]
        %v1065 = vld [vmem:[#allocation2 + $0x8] sm:$0xff]
        %v1066 = vld [vmem:[#allocation2 + $0x10] sm:$0xff]
        %v1067 = vld [vmem:[#allocation2 + $0x18] sm:$0xff]
        %v1068 = vld [vmem:[#allocation2 + $0x20] sm:$0xff]
        %v1069 = vld [vmem:[#allocation2 + $0x28] sm:$0xff]
        %v1070 = vld [vmem:[#allocation2 + $0x30] sm:$0xff]
        %v1071 = vld [vmem:[#allocation2 + $0x38] sm:$0xff]
        %v1072 = vld [vmem:[#allocation2 + $0x40] sm:$0xff]
        %v1073 = vld [vmem:[#allocation2 + $0x48] sm:$0xff]
        %v1074 = vld [vmem:[#allocation2 + $0x50] sm:$0xff]
        %v1075 = vld [vmem:[#allocation2 + $0x58] sm:$0xff]
        %v1076 = vld [vmem:[#allocation2 + $0x60] sm:$0xff]
        %v1077 = vld [vmem:[#allocation2 + $0x68] sm:$0xff]
        %v1078 = vld [vmem:[#allocation2 + $0x70] sm:$0xff]
        %v1079 = vld [vmem:[#allocation2 + $0x78] sm:$0xff]
        %v1080 = vld [vmem:[#allocation2 + $0x80] sm:$0xff]
        %v1081 = vld [vmem:[#allocation2 + $0x88] sm:$0xff]
        %v1082 = vld [vmem:[#allocation2 + $0x90] sm:$0xff]
        %v1083 = vld [vmem:[#allocation2 + $0x98] sm:$0xff]
        %v1084 = vld [vmem:[#allocation2 + $0xa0] sm:$0xff]
        %v1085 = vld [vmem:[#allocation2 + $0xa8] sm:$0xff]
        %v1086 = vld [vmem:[#allocation2 + $0xb0] sm:$0xff]
        %v1087 = vld [vmem:[#allocation2 + $0xb8] sm:$0xff]
        %v1088 = vld [vmem:[#allocation2 + $0xc0] sm:$0xff]
        %v1089 = vld [vmem:[#allocation2 + $0xc8] sm:$0xff]
        %v1090 = vld [vmem:[#allocation2 + $0xd0] sm:$0xff]
        %v1091 = vld [vmem:[#allocation2 + $0xd8] sm:$0xff]
        %v1092 = vld [vmem:[#allocation2 + $0xe0] sm:$0xff]
        %v1093 = vld [vmem:[#allocation2 + $0xe8] sm:$0xff]
        %v1094 = vld [vmem:[#allocation2 + $0xf0] sm:$0xff]
        %v1095 = vld [vmem:[#allocation2 + $0xf8] sm:$0xff]
        %v1096 = vld [vmem:[%s219] sm:$0xff]
        %v1097 = vld [vmem:[%s219 + $0x8] sm:$0xf]
        %v1098 = vld [vmem:[%s219 + $0xc] sm:$0xff]
        %v1099 = vld [vmem:[%s219 + $0x14] sm:$0xf]
        %v1100 = vld [vmem:[%s219 + $0x18] sm:$0xff]
        %v1101 = vld [vmem:[%s219 + $0x20] sm:$0xf]
        %v1102 = vld [vmem:[%s219 + $0x24] sm:$0xff]
        %v1103 = vld [vmem:[%s219 + $0x2c] sm:$0xf]
        %v1104 = vld [vmem:[%s219 + $0x30] sm:$0xff]
        %v1105 = vld [vmem:[%s219 + $0x38] sm:$0xf]
        %v1106 = vld [vmem:[%s219 + $0x3c] sm:$0xff]
        %v1107 = vld [vmem:[%s219 + $0x44] sm:$0xf]
        %v1108 = vld [vmem:[%s219 + $0x48] sm:$0xff]
        %v1109 = vld [vmem:[%s219 + $0x50] sm:$0xf]
        %v1110 = vld [vmem:[%s219 + $0x54] sm:$0xff]
        %v1111 = vld [vmem:[%s219 + $0x5c] sm:$0xf]
        %v1112 = vld [vmem:[%s219 + $0x60] sm:$0xff]
        %v1113 = vld [vmem:[%s219 + $0x68] sm:$0xf]
        %v1114 = vld [vmem:[%s219 + $0x6c] sm:$0xff]
        %v1115 = vld [vmem:[%s219 + $0x74] sm:$0xf]
        %v1116 = vld [vmem:[%s219 + $0x78] sm:$0xff]
        %v1117 = vld [vmem:[%s219 + $0x80] sm:$0xf]
        %v1118 = vld [vmem:[%s219 + $0x84] sm:$0xff]
        %v1119 = vld [vmem:[%s219 + $0x8c] sm:$0xf]
        %v1120 = vld [vmem:[%s219 + $0x90] sm:$0xff]
        %v1121 = vld [vmem:[%s219 + $0x98] sm:$0xf]
        %v1122 = vld [vmem:[%s219 + $0x9c] sm:$0xff]
        %v1123 = vld [vmem:[%s219 + $0xa4] sm:$0xf]
        %v1124 = vld [vmem:[%s219 + $0xa8] sm:$0xff]
        %v1125 = vld [vmem:[%s219 + $0xb0] sm:$0xf]
        %v1126 = vld [vmem:[%s219 + $0xb4] sm:$0xff]
        %v1127 = vld [vmem:[%s219 + $0xbc] sm:$0xf]
        %v1128 = vld [vmem:[%s219 + $0xc0] sm:$0xff]
        %v1129 = vld [vmem:[%s219 + $0xc8] sm:$0xf]
        %v1130 = vld [vmem:[%s219 + $0xcc] sm:$0xff]
        %v1131 = vld [vmem:[%s219 + $0xd4] sm:$0xf]
        %v1132 = vld [vmem:[%s219 + $0xd8] sm:$0xff]
        %v1133 = vld [vmem:[%s219 + $0xe0] sm:$0xf]
        %v1134 = vld [vmem:[%s219 + $0xe4] sm:$0xff]
        %v1135 = vld [vmem:[%s219 + $0xec] sm:$0xf]
        %v1136 = vld [vmem:[%s219 + $0xf0] sm:$0xff]
        %v1137 = vld [vmem:[%s219 + $0xf8] sm:$0xf]
        %v1138 = vld [vmem:[%s219 + $0xfc] sm:$0xff]
        %v1139 = vld [vmem:[%s219 + $0x104] sm:$0xf]
        %v1140 = vld [vmem:[%s219 + $0x108] sm:$0xff]
        %v1141 = vld [vmem:[%s219 + $0x110] sm:$0xf]
        %v1142 = vld [vmem:[%s219 + $0x114] sm:$0xff]
        %v1143 = vld [vmem:[%s219 + $0x11c] sm:$0xf]
        %v1144 = vld [vmem:[%s219 + $0x120] sm:$0xff]
        %v1145 = vld [vmem:[%s219 + $0x128] sm:$0xf]
        %v1146 = vld [vmem:[%s219 + $0x12c] sm:$0xff]
        %v1147 = vld [vmem:[%s219 + $0x134] sm:$0xf]
        %v1148 = vld [vmem:[%s219 + $0x138] sm:$0xff]
        %v1149 = vld [vmem:[%s219 + $0x140] sm:$0xf]
        %v1150 = vld [vmem:[%s219 + $0x144] sm:$0xff]
        %v1151 = vld [vmem:[%s219 + $0x14c] sm:$0xf]
        %v1152 = vld [vmem:[%s219 + $0x150] sm:$0xff]
        %v1153 = vld [vmem:[%s219 + $0x158] sm:$0xf]
        %v1154 = vld [vmem:[%s219 + $0x15c] sm:$0xff]
        %v1155 = vld [vmem:[%s219 + $0x164] sm:$0xf]
        %v1156 = vld [vmem:[%s219 + $0x168] sm:$0xff]
        %v1157 = vld [vmem:[%s219 + $0x170] sm:$0xf]
        %v1158 = vld [vmem:[%s219 + $0x174] sm:$0xff]
        %v1159 = vld [vmem:[%s219 + $0x17c] sm:$0xf]
        %v1192 = vunpack.c.l.b16 %v1064
        %v1193 = vunpack.c.h.b16 %v1064
        %v1194 = vunpack.c.l.b16 %v1065
        %v1195 = vunpack.c.h.b16 %v1065
        %v1196 = vunpack.c.l.b16 %v1066
        %v1197 = vunpack.c.h.b16 %v1066
        %v1198 = vunpack.c.l.b16 %v1067
        %v1199 = vunpack.c.h.b16 %v1067
        %v1200 = vunpack.c.l.b16 %v1068
        %v1201 = vunpack.c.h.b16 %v1068
        %v1202 = vunpack.c.l.b16 %v1069
        %v1203 = vunpack.c.h.b16 %v1069
        %v1204 = vunpack.c.l.b16 %v1070
        %v1205 = vunpack.c.h.b16 %v1070
        %v1206 = vunpack.c.l.b16 %v1071
        %v1207 = vunpack.c.h.b16 %v1071
        %v1208 = vunpack.c.l.b16 %v1072
        %v1209 = vunpack.c.h.b16 %v1072
        %v1210 = vunpack.c.l.b16 %v1073
        %v1211 = vunpack.c.h.b16 %v1073
        %v1212 = vunpack.c.l.b16 %v1074
        %v1213 = vunpack.c.h.b16 %v1074
        %v1214 = vunpack.c.l.b16 %v1075
        %v1215 = vunpack.c.h.b16 %v1075
        %v1216 = vunpack.c.l.b16 %v1076
        %v1217 = vunpack.c.h.b16 %v1076
        %v1218 = vunpack.c.l.b16 %v1077
        %v1219 = vunpack.c.h.b16 %v1077
        %v1220 = vunpack.c.l.b16 %v1078
        %v1221 = vunpack.c.h.b16 %v1078
        %v1222 = vunpack.c.l.b16 %v1079
        %v1223 = vunpack.c.h.b16 %v1079
        %v1224 = vunpack.c.l.b16 %v1080
        %v1225 = vunpack.c.h.b16 %v1080
        %v1226 = vunpack.c.l.b16 %v1081
        %v1227 = vunpack.c.h.b16 %v1081
        %v1228 = vunpack.c.l.b16 %v1082
        %v1229 = vunpack.c.h.b16 %v1082
        %v1230 = vunpack.c.l.b16 %v1083
        %v1231 = vunpack.c.h.b16 %v1083
        %v1232 = vunpack.c.l.b16 %v1084
        %v1233 = vunpack.c.h.b16 %v1084
        %v1234 = vunpack.c.l.b16 %v1085
        %v1235 = vunpack.c.h.b16 %v1085
        %v1236 = vunpack.c.l.b16 %v1086
        %v1237 = vunpack.c.h.b16 %v1086
        %v1238 = vunpack.c.l.b16 %v1087
        %v1239 = vunpack.c.h.b16 %v1087
        %v1240 = vunpack.c.l.b16 %v1088
        %v1241 = vunpack.c.h.b16 %v1088
        %v1242 = vunpack.c.l.b16 %v1089
        %v1243 = vunpack.c.h.b16 %v1089
        %v1244 = vunpack.c.l.b16 %v1090
        %v1245 = vunpack.c.h.b16 %v1090
        %v1246 = vunpack.c.l.b16 %v1091
        %v1247 = vunpack.c.h.b16 %v1091
        %v1248 = vunpack.c.l.b16 %v1092
        %v1249 = vunpack.c.h.b16 %v1092
        %v1250 = vunpack.c.l.b16 %v1093
        %v1251 = vunpack.c.h.b16 %v1093
        %v1252 = vunpack.c.l.b16 %v1094
        %v1253 = vunpack.c.h.b16 %v1094
        %v1254 = vunpack.c.l.b16 %v1095
        %v1255 = vunpack.c.h.b16 %v1095
        %v1256 = vpack.c.b16 %v1194, %v1192
        %v1257 = vpack.c.b16 %v1195, %v1193
        %v1258 = vpack.c.b16 %v1198, %v1196
        %v1259 = vpack.c.b16 %v1199, %v1197
        %v1260 = vpack.c.b16 %v1202, %v1200
        %v1261 = vpack.c.b16 %v1203, %v1201
        %v1262 = vpack.c.b16 %v1206, %v1204
        %v1263 = vpack.c.b16 %v1207, %v1205
        %v1264 = vpack.c.b16 %v1210, %v1208
        %v1265 = vpack.c.b16 %v1211, %v1209
        %v1266 = vpack.c.b16 %v1214, %v1212
        %v1267 = vpack.c.b16 %v1215, %v1213
        %v1268 = vpack.c.b16 %v1218, %v1216
        %v1269 = vpack.c.b16 %v1219, %v1217
        %v1270 = vpack.c.b16 %v1222, %v1220
        %v1271 = vpack.c.b16 %v1223, %v1221
        %v1272 = vpack.c.b16 %v1226, %v1224
        %v1273 = vpack.c.b16 %v1227, %v1225
        %v1274 = vpack.c.b16 %v1230, %v1228
        %v1275 = vpack.c.b16 %v1231, %v1229
        %v1276 = vpack.c.b16 %v1234, %v1232
        %v1277 = vpack.c.b16 %v1235, %v1233
        %v1278 = vpack.c.b16 %v1238, %v1236
        %v1279 = vpack.c.b16 %v1239, %v1237
        %v1280 = vpack.c.b16 %v1242, %v1240
        %v1281 = vpack.c.b16 %v1243, %v1241
        %v1282 = vpack.c.b16 %v1246, %v1244
        %v1283 = vpack.c.b16 %v1247, %v1245
        %v1284 = vpack.c.b16 %v1250, %v1248
        %v1285 = vpack.c.b16 %v1251, %v1249
        %v1286 = vpack.c.b16 %v1254, %v1252
        %v1287 = vpack.c.b16 %v1255, %v1253
        %v1384 = vunpack.c.l.b16 %v1096
        %v1385 = vunpack.c.h.b16 %v1096
        %v1386 = vunpack.c.l.b16 %v1097
        %v1387 = vunpack.c.l.b16 %v1098
        %v1388 = vunpack.c.h.b16 %v1098
        %v1389 = vunpack.c.l.b16 %v1099
        %v1390 = vunpack.c.l.b16 %v1100
        %v1391 = vunpack.c.h.b16 %v1100
        %v1392 = vunpack.c.l.b16 %v1101
        %v1393 = vunpack.c.l.b16 %v1102
        %v1394 = vunpack.c.h.b16 %v1102
        %v1395 = vunpack.c.l.b16 %v1103
        %v1396 = vunpack.c.l.b16 %v1104
        %v1397 = vunpack.c.h.b16 %v1104
        %v1398 = vunpack.c.l.b16 %v1105
        %v1399 = vunpack.c.l.b16 %v1106
        %v1400 = vunpack.c.h.b16 %v1106
        %v1401 = vunpack.c.l.b16 %v1107
        %v1402 = vunpack.c.l.b16 %v1108
        %v1403 = vunpack.c.h.b16 %v1108
        %v1404 = vunpack.c.l.b16 %v1109
        %v1405 = vunpack.c.l.b16 %v1110
        %v1406 = vunpack.c.h.b16 %v1110
        %v1407 = vunpack.c.l.b16 %v1111
        %v1408 = vunpack.c.l.b16 %v1112
        %v1409 = vunpack.c.h.b16 %v1112
        %v1410 = vunpack.c.l.b16 %v1113
        %v1411 = vunpack.c.l.b16 %v1114
        %v1412 = vunpack.c.h.b16 %v1114
        %v1413 = vunpack.c.l.b16 %v1115
        %v1414 = vunpack.c.l.b16 %v1116
        %v1415 = vunpack.c.h.b16 %v1116
        %v1416 = vunpack.c.l.b16 %v1117
        %v1417 = vunpack.c.l.b16 %v1118
        %v1418 = vunpack.c.h.b16 %v1118
        %v1419 = vunpack.c.l.b16 %v1119
        %v1420 = vunpack.c.l.b16 %v1120
        %v1421 = vunpack.c.h.b16 %v1120
        %v1422 = vunpack.c.l.b16 %v1121
        %v1423 = vunpack.c.l.b16 %v1122
        %v1424 = vunpack.c.h.b16 %v1122
        %v1425 = vunpack.c.l.b16 %v1123
        %v1426 = vunpack.c.l.b16 %v1124
        %v1427 = vunpack.c.h.b16 %v1124
        %v1428 = vunpack.c.l.b16 %v1125
        %v1429 = vunpack.c.l.b16 %v1126
        %v1430 = vunpack.c.h.b16 %v1126
        %v1431 = vunpack.c.l.b16 %v1127
        %v1432 = vunpack.c.l.b16 %v1128
        %v1433 = vunpack.c.h.b16 %v1128
        %v1434 = vunpack.c.l.b16 %v1129
        %v1435 = vunpack.c.l.b16 %v1130
        %v1436 = vunpack.c.h.b16 %v1130
        %v1437 = vunpack.c.l.b16 %v1131
        %v1438 = vunpack.c.l.b16 %v1132
        %v1439 = vunpack.c.h.b16 %v1132
        %v1440 = vunpack.c.l.b16 %v1133
        %v1441 = vunpack.c.l.b16 %v1134
        %v1442 = vunpack.c.h.b16 %v1134
        %v1443 = vunpack.c.l.b16 %v1135
        %v1444 = vunpack.c.l.b16 %v1136
        %v1445 = vunpack.c.h.b16 %v1136
        %v1446 = vunpack.c.l.b16 %v1137
        %v1447 = vunpack.c.l.b16 %v1138
        %v1448 = vunpack.c.h.b16 %v1138
        %v1449 = vunpack.c.l.b16 %v1139
        %v1450 = vunpack.c.l.b16 %v1140
        %v1451 = vunpack.c.h.b16 %v1140
        %v1452 = vunpack.c.l.b16 %v1141
        %v1453 = vunpack.c.l.b16 %v1142
        %v1454 = vunpack.c.h.b16 %v1142
        %v1455 = vunpack.c.l.b16 %v1143
        %v1456 = vunpack.c.l.b16 %v1144
        %v1457 = vunpack.c.h.b16 %v1144
        %v1458 = vunpack.c.l.b16 %v1145
        %v1459 = vunpack.c.l.b16 %v1146
        %v1460 = vunpack.c.h.b16 %v1146
        %v1461 = vunpack.c.l.b16 %v1147
        %v1462 = vunpack.c.l.b16 %v1148
        %v1463 = vunpack.c.h.b16 %v1148
        %v1464 = vunpack.c.l.b16 %v1149
        %v1465 = vunpack.c.l.b16 %v1150
        %v1466 = vunpack.c.h.b16 %v1150
        %v1467 = vunpack.c.l.b16 %v1151
        %v1468 = vunpack.c.l.b16 %v1152
        %v1469 = vunpack.c.h.b16 %v1152
        %v1470 = vunpack.c.l.b16 %v1153
        %v1471 = vunpack.c.l.b16 %v1154
        %v1472 = vunpack.c.h.b16 %v1154
        %v1473 = vunpack.c.l.b16 %v1155
        %v1474 = vunpack.c.l.b16 %v1156
        %v1475 = vunpack.c.h.b16 %v1156
        %v1476 = vunpack.c.l.b16 %v1157
        %v1477 = vunpack.c.l.b16 %v1158
        %v1478 = vunpack.c.h.b16 %v1158
        %v1479 = vunpack.c.l.b16 %v1159
        %v1480 = vpack.c.b16 %v1387, %v1384
        %v1481 = vpack.c.b16 %v1388, %v1385
        %v1482 = vpack.c.b16 %v1389, %v1386
        %v1483 = vpack.c.b16 %v1393, %v1390
        %v1484 = vpack.c.b16 %v1394, %v1391
        %v1485 = vpack.c.b16 %v1395, %v1392
        %v1486 = vpack.c.b16 %v1399, %v1396
        %v1487 = vpack.c.b16 %v1400, %v1397
        %v1488 = vpack.c.b16 %v1401, %v1398
        %v1489 = vpack.c.b16 %v1405, %v1402
        %v1490 = vpack.c.b16 %v1406, %v1403
        %v1491 = vpack.c.b16 %v1407, %v1404
        %v1492 = vpack.c.b16 %v1411, %v1408
        %v1493 = vpack.c.b16 %v1412, %v1409
        %v1494 = vpack.c.b16 %v1413, %v1410
        %v1495 = vpack.c.b16 %v1417, %v1414
        %v1496 = vpack.c.b16 %v1418, %v1415
        %v1497 = vpack.c.b16 %v1419, %v1416
        %v1498 = vpack.c.b16 %v1423, %v1420
        %v1499 = vpack.c.b16 %v1424, %v1421
        %v1500 = vpack.c.b16 %v1425, %v1422
        %v1501 = vpack.c.b16 %v1429, %v1426
        %v1502 = vpack.c.b16 %v1430, %v1427
        %v1503 = vpack.c.b16 %v1431, %v1428
        %v1504 = vpack.c.b16 %v1435, %v1432
        %v1505 = vpack.c.b16 %v1436, %v1433
        %v1506 = vpack.c.b16 %v1437, %v1434
        %v1507 = vpack.c.b16 %v1441, %v1438
        %v1508 = vpack.c.b16 %v1442, %v1439
        %v1509 = vpack.c.b16 %v1443, %v1440
        %v1510 = vpack.c.b16 %v1447, %v1444
        %v1511 = vpack.c.b16 %v1448, %v1445
        %v1512 = vpack.c.b16 %v1449, %v1446
        %v1513 = vpack.c.b16 %v1453, %v1450
        %v1514 = vpack.c.b16 %v1454, %v1451
        %v1515 = vpack.c.b16 %v1455, %v1452
        %v1516 = vpack.c.b16 %v1459, %v1456
        %v1517 = vpack.c.b16 %v1460, %v1457
        %v1518 = vpack.c.b16 %v1461, %v1458
        %v1519 = vpack.c.b16 %v1465, %v1462
        %v1520 = vpack.c.b16 %v1466, %v1463
        %v1521 = vpack.c.b16 %v1467, %v1464
        %v1522 = vpack.c.b16 %v1471, %v1468
        %v1523 = vpack.c.b16 %v1472, %v1469
        %v1524 = vpack.c.b16 %v1473, %v1470
        %v1525 = vpack.c.b16 %v1477, %v1474
        %v1526 = vpack.c.b16 %v1478, %v1475
        %v1527 = vpack.c.b16 %v1479, %v1476
        %1576 = vmatpush.bf16.msra.mxu0 %v1501
        %1577 = vmatpush.bf16.msra.mxu0 %v1498
        %1578 = vmatpush.bf16.msra.mxu0 %v1495
        %1579 = vmatpush.bf16.msra.mxu0 %v1492
        %1580 = vmatpush.bf16.msra.mxu0 %v1489
        %1581 = vmatpush.bf16.msra.mxu0 %v1486
        %1582 = vmatpush.bf16.msra.mxu0 %v1483
        %1583 = vmatpush.bf16.msra.mxu0 %v1480
        %1584 = vmatmul.bf16.gmra.mxu0 %v1256
        %v1585 = vpop.f32.mrf.mxu0
        %v1586 = vadd.f32 0.0, %v1585
        %v1587 = vpop.f32.mrf.mxu0
        %v1588 = vadd.f32 0.0, %v1587
        %1589 = vmatmul.bf16.gmra.mxu0 %v1258
        %v1590 = vpop.f32.mrf.mxu0
        %v1591 = vadd.f32 0.0, %v1590
        %v1592 = vpop.f32.mrf.mxu0
        %v1593 = vadd.f32 0.0, %v1592
        %1594 = vmatmul.bf16.gmra.mxu0 %v1260
        %v1595 = vpop.f32.mrf.mxu0
        %v1596 = vadd.f32 0.0, %v1595
        %v1597 = vpop.f32.mrf.mxu0
        %v1598 = vadd.f32 0.0, %v1597
        %1599 = vmatmul.bf16.gmra.mxu0 %v1262
        %v1600 = vpop.f32.mrf.mxu0
        %v1601 = vadd.f32 0.0, %v1600
        %v1602 = vpop.f32.mrf.mxu0
        %v1603 = vadd.f32 0.0, %v1602
        %1604 = vmatmul.bf16.gmra.mxu0 %v1264
        %v1605 = vpop.f32.mrf.mxu0
        %v1606 = vadd.f32 0.0, %v1605
        %v1607 = vpop.f32.mrf.mxu0
        %v1608 = vadd.f32 0.0, %v1607
        %1609 = vmatmul.bf16.gmra.mxu0 %v1266
        %v1610 = vpop.f32.mrf.mxu0
        %v1611 = vadd.f32 0.0, %v1610
        %v1612 = vpop.f32.mrf.mxu0
        %v1613 = vadd.f32 0.0, %v1612
        %1614 = vmatmul.bf16.gmra.mxu0 %v1268
        %v1615 = vpop.f32.mrf.mxu0
        %v1616 = vadd.f32 0.0, %v1615
        %v1617 = vpop.f32.mrf.mxu0
        %v1618 = vadd.f32 0.0, %v1617
        %1619 = vmatmul.bf16.gmra.mxu0 %v1270
        %v1620 = vpop.f32.mrf.mxu0
        %v1621 = vadd.f32 0.0, %v1620
        %v1622 = vpop.f32.mrf.mxu0
        %v1623 = vadd.f32 0.0, %v1622
        %1624 = vmatmul.bf16.gmra.mxu0 %v1272
        %v1625 = vpop.f32.mrf.mxu0
        %v1626 = vadd.f32 0.0, %v1625
        %v1627 = vpop.f32.mrf.mxu0
        %v1628 = vadd.f32 0.0, %v1627
        %1629 = vmatmul.bf16.gmra.mxu0 %v1274
        %v1630 = vpop.f32.mrf.mxu0
        %v1631 = vadd.f32 0.0, %v1630
        %v1632 = vpop.f32.mrf.mxu0
        %v1633 = vadd.f32 0.0, %v1632
        %1634 = vmatmul.bf16.gmra.mxu0 %v1276
        %v1635 = vpop.f32.mrf.mxu0
        %v1636 = vadd.f32 0.0, %v1635
        %v1637 = vpop.f32.mrf.mxu0
        %v1638 = vadd.f32 0.0, %v1637
        %1639 = vmatmul.bf16.gmra.mxu0 %v1278
        %v1640 = vpop.f32.mrf.mxu0
        %v1641 = vadd.f32 0.0, %v1640
        %v1642 = vpop.f32.mrf.mxu0
        %v1643 = vadd.f32 0.0, %v1642
        %1644 = vmatmul.bf16.gmra.mxu0 %v1280
        %v1645 = vpop.f32.mrf.mxu0
        %v1646 = vadd.f32 0.0, %v1645
        %v1647 = vpop.f32.mrf.mxu0
        %v1648 = vadd.f32 0.0, %v1647
        %1649 = vmatmul.bf16.gmra.mxu0 %v1282
        %v1650 = vpop.f32.mrf.mxu0
        %v1651 = vadd.f32 0.0, %v1650
        %v1652 = vpop.f32.mrf.mxu0
        %v1653 = vadd.f32 0.0, %v1652
        %1654 = vmatmul.bf16.gmra.mxu0 %v1284
        %v1655 = vpop.f32.mrf.mxu0
        %v1656 = vadd.f32 0.0, %v1655
        %v1657 = vpop.f32.mrf.mxu0
        %v1658 = vadd.f32 0.0, %v1657
        %1659 = vmatmul.bf16.gmra.mxu0 %v1286
        %v1660 = vpop.f32.mrf.mxu0
        %v1661 = vadd.f32 0.0, %v1660
        %v1662 = vpop.f32.mrf.mxu0
        %v1663 = vadd.f32 0.0, %v1662
        %1664 = vdwg.mxu0
        %1665 = vmatpush.bf16.msra.mxu0 %v1525
        %1666 = vmatpush.bf16.msra.mxu0 %v1522
        %1667 = vmatpush.bf16.msra.mxu0 %v1519
        %1668 = vmatpush.bf16.msra.mxu0 %v1516
        %1669 = vmatpush.bf16.msra.mxu0 %v1513
        %1670 = vmatpush.bf16.msra.mxu0 %v1510
        %1671 = vmatpush.bf16.msra.mxu0 %v1507
        %1672 = vmatpush.bf16.msra.mxu0 %v1504
        %1673 = vmatmul.bf16.gmra.mxu0 %v1257
        %v1674 = vpop.f32.mrf.mxu0
        %v1675 = vadd.f32 %v1586, %v1674
        %v1676 = vpop.f32.mrf.mxu0
        %v1677 = vadd.f32 %v1588, %v1676
        %1678 = vmatmul.bf16.gmra.mxu0 %v1259
        %v1679 = vpop.f32.mrf.mxu0
        %v1680 = vadd.f32 %v1591, %v1679
        %v1681 = vpop.f32.mrf.mxu0
        %v1682 = vadd.f32 %v1593, %v1681
        %1683 = vmatmul.bf16.gmra.mxu0 %v1261
        %v1684 = vpop.f32.mrf.mxu0
        %v1685 = vadd.f32 %v1596, %v1684
        %v1686 = vpop.f32.mrf.mxu0
        %v1687 = vadd.f32 %v1598, %v1686
        %1688 = vmatmul.bf16.gmra.mxu0 %v1263
        %v1689 = vpop.f32.mrf.mxu0
        %v1690 = vadd.f32 %v1601, %v1689
        %v1691 = vpop.f32.mrf.mxu0
        %v1692 = vadd.f32 %v1603, %v1691
        %1693 = vmatmul.bf16.gmra.mxu0 %v1265
        %v1694 = vpop.f32.mrf.mxu0
        %v1695 = vadd.f32 %v1606, %v1694
        %v1696 = vpop.f32.mrf.mxu0
        %v1697 = vadd.f32 %v1608, %v1696
        %1698 = vmatmul.bf16.gmra.mxu0 %v1267
        %v1699 = vpop.f32.mrf.mxu0
        %v1700 = vadd.f32 %v1611, %v1699
        %v1701 = vpop.f32.mrf.mxu0
        %v1702 = vadd.f32 %v1613, %v1701
        %1703 = vmatmul.bf16.gmra.mxu0 %v1269
        %v1704 = vpop.f32.mrf.mxu0
        %v1705 = vadd.f32 %v1616, %v1704
        %v1706 = vpop.f32.mrf.mxu0
        %v1707 = vadd.f32 %v1618, %v1706
        %1708 = vmatmul.bf16.gmra.mxu0 %v1271
        %v1709 = vpop.f32.mrf.mxu0
        %v1710 = vadd.f32 %v1621, %v1709
        %v1711 = vpop.f32.mrf.mxu0
        %v1712 = vadd.f32 %v1623, %v1711
        %1713 = vmatmul.bf16.gmra.mxu0 %v1273
        %v1714 = vpop.f32.mrf.mxu0
        %v1715 = vadd.f32 %v1626, %v1714
        %v1716 = vpop.f32.mrf.mxu0
        %v1717 = vadd.f32 %v1628, %v1716
        %1718 = vmatmul.bf16.gmra.mxu0 %v1275
        %v1719 = vpop.f32.mrf.mxu0
        %v1720 = vadd.f32 %v1631, %v1719
        %v1721 = vpop.f32.mrf.mxu0
        %v1722 = vadd.f32 %v1633, %v1721
        %1723 = vmatmul.bf16.gmra.mxu0 %v1277
        %v1724 = vpop.f32.mrf.mxu0
        %v1725 = vadd.f32 %v1636, %v1724
        %v1726 = vpop.f32.mrf.mxu0
        %v1727 = vadd.f32 %v1638, %v1726
        %1728 = vmatmul.bf16.gmra.mxu0 %v1279
        %v1729 = vpop.f32.mrf.mxu0
        %v1730 = vadd.f32 %v1641, %v1729
        %v1731 = vpop.f32.mrf.mxu0
        %v1732 = vadd.f32 %v1643, %v1731
        %1733 = vmatmul.bf16.gmra.mxu0 %v1281
        %v1734 = vpop.f32.mrf.mxu0
        %v1735 = vadd.f32 %v1646, %v1734
        %v1736 = vpop.f32.mrf.mxu0
        %v1737 = vadd.f32 %v1648, %v1736
        %1738 = vmatmul.bf16.gmra.mxu0 %v1283
        %v1739 = vpop.f32.mrf.mxu0
        %v1740 = vadd.f32 %v1651, %v1739
        %v1741 = vpop.f32.mrf.mxu0
        %v1742 = vadd.f32 %v1653, %v1741
        %1743 = vmatmul.bf16.gmra.mxu0 %v1285
        %v1744 = vpop.f32.mrf.mxu0
        %v1745 = vadd.f32 %v1656, %v1744
        %v1746 = vpop.f32.mrf.mxu0
        %v1747 = vadd.f32 %v1658, %v1746
        %1748 = vmatmul.bf16.gmra.mxu0 %v1287
        %v1749 = vpop.f32.mrf.mxu0
        %v1750 = vadd.f32 %v1661, %v1749
        %v1751 = vpop.f32.mrf.mxu0
        %v1752 = vadd.f32 %v1663, %v1751
        %1753 = vdwg.mxu0
        %1754 = vmatpush.bf16.msra.mxu0 %v1502
        %1755 = vmatpush.bf16.msra.mxu0 %v1499
        %1756 = vmatpush.bf16.msra.mxu0 %v1496
        %1757 = vmatpush.bf16.msra.mxu0 %v1493
        %1758 = vmatpush.bf16.msra.mxu0 %v1490
        %1759 = vmatpush.bf16.msra.mxu0 %v1487
        %1760 = vmatpush.bf16.msra.mxu0 %v1484
        %1761 = vmatpush.bf16.msra.mxu0 %v1481
        %1762 = vmatmul.bf16.gmra.mxu0 %v1256
        %v1763 = vpop.f32.mrf.mxu0
        %v1764 = vadd.f32 0.0, %v1763
        %v1765 = vpop.f32.mrf.mxu0
        %v1766 = vadd.f32 0.0, %v1765
        %1767 = vmatmul.bf16.gmra.mxu0 %v1258
        %v1768 = vpop.f32.mrf.mxu0
        %v1769 = vadd.f32 0.0, %v1768
        %v1770 = vpop.f32.mrf.mxu0
        %v1771 = vadd.f32 0.0, %v1770
        %1772 = vmatmul.bf16.gmra.mxu0 %v1260
        %v1773 = vpop.f32.mrf.mxu0
        %v1774 = vadd.f32 0.0, %v1773
        %v1775 = vpop.f32.mrf.mxu0
        %v1776 = vadd.f32 0.0, %v1775
        %1777 = vmatmul.bf16.gmra.mxu0 %v1262
        %v1778 = vpop.f32.mrf.mxu0
        %v1779 = vadd.f32 0.0, %v1778
        %v1780 = vpop.f32.mrf.mxu0
        %v1781 = vadd.f32 0.0, %v1780
        %1782 = vmatmul.bf16.gmra.mxu0 %v1264
        %v1783 = vpop.f32.mrf.mxu0
        %v1784 = vadd.f32 0.0, %v1783
        %v1785 = vpop.f32.mrf.mxu0
        %v1786 = vadd.f32 0.0, %v1785
        %1787 = vmatmul.bf16.gmra.mxu0 %v1266
        %v1788 = vpop.f32.mrf.mxu0
        %v1789 = vadd.f32 0.0, %v1788
        %v1790 = vpop.f32.mrf.mxu0
        %v1791 = vadd.f32 0.0, %v1790
        %1792 = vmatmul.bf16.gmra.mxu0 %v1268
        %v1793 = vpop.f32.mrf.mxu0
        %v1794 = vadd.f32 0.0, %v1793
        %v1795 = vpop.f32.mrf.mxu0
        %v1796 = vadd.f32 0.0, %v1795
        %1797 = vmatmul.bf16.gmra.mxu0 %v1270
        %v1798 = vpop.f32.mrf.mxu0
        %v1799 = vadd.f32 0.0, %v1798
        %v1800 = vpop.f32.mrf.mxu0
        %v1801 = vadd.f32 0.0, %v1800
        %1802 = vmatmul.bf16.gmra.mxu0 %v1272
        %v1803 = vpop.f32.mrf.mxu0
        %v1804 = vadd.f32 0.0, %v1803
        %v1805 = vpop.f32.mrf.mxu0
        %v1806 = vadd.f32 0.0, %v1805
        %1807 = vmatmul.bf16.gmra.mxu0 %v1274
        %v1808 = vpop.f32.mrf.mxu0
        %v1809 = vadd.f32 0.0, %v1808
        %v1810 = vpop.f32.mrf.mxu0
        %v1811 = vadd.f32 0.0, %v1810
        %1812 = vmatmul.bf16.gmra.mxu0 %v1276
        %v1813 = vpop.f32.mrf.mxu0
        %v1814 = vadd.f32 0.0, %v1813
        %v1815 = vpop.f32.mrf.mxu0
        %v1816 = vadd.f32 0.0, %v1815
        %1817 = vmatmul.bf16.gmra.mxu0 %v1278
        %v1818 = vpop.f32.mrf.mxu0
        %v1819 = vadd.f32 0.0, %v1818
        %v1820 = vpop.f32.mrf.mxu0
        %v1821 = vadd.f32 0.0, %v1820
        %1822 = vmatmul.bf16.gmra.mxu0 %v1280
        %v1823 = vpop.f32.mrf.mxu0
        %v1824 = vadd.f32 0.0, %v1823
        %v1825 = vpop.f32.mrf.mxu0
        %v1826 = vadd.f32 0.0, %v1825
        %1827 = vmatmul.bf16.gmra.mxu0 %v1282
        %v1828 = vpop.f32.mrf.mxu0
        %v1829 = vadd.f32 0.0, %v1828
        %v1830 = vpop.f32.mrf.mxu0
        %v1831 = vadd.f32 0.0, %v1830
        %1832 = vmatmul.bf16.gmra.mxu0 %v1284
        %v1833 = vpop.f32.mrf.mxu0
        %v1834 = vadd.f32 0.0, %v1833
        %v1835 = vpop.f32.mrf.mxu0
        %v1836 = vadd.f32 0.0, %v1835
        %1837 = vmatmul.bf16.gmra.mxu0 %v1286
        %v1838 = vpop.f32.mrf.mxu0
        %v1839 = vadd.f32 0.0, %v1838
        %v1840 = vpop.f32.mrf.mxu0
        %v1841 = vadd.f32 0.0, %v1840
        %1842 = vdwg.mxu0
        %1843 = vmatpush.bf16.msra.mxu0 %v1526
        %1844 = vmatpush.bf16.msra.mxu0 %v1523
        %1845 = vmatpush.bf16.msra.mxu0 %v1520
        %1846 = vmatpush.bf16.msra.mxu0 %v1517
        %1847 = vmatpush.bf16.msra.mxu0 %v1514
        %1848 = vmatpush.bf16.msra.mxu0 %v1511
        %1849 = vmatpush.bf16.msra.mxu0 %v1508
        %1850 = vmatpush.bf16.msra.mxu0 %v1505
        %1851 = vmatmul.bf16.gmra.mxu0 %v1257
        %v1852 = vpop.f32.mrf.mxu0
        %v1853 = vadd.f32 %v1764, %v1852
        %v1854 = vpop.f32.mrf.mxu0
        %v1855 = vadd.f32 %v1766, %v1854
        %1856 = vmatmul.bf16.gmra.mxu0 %v1259
        %v1857 = vpop.f32.mrf.mxu0
        %v1858 = vadd.f32 %v1769, %v1857
        %v1859 = vpop.f32.mrf.mxu0
        %v1860 = vadd.f32 %v1771, %v1859
        %1861 = vmatmul.bf16.gmra.mxu0 %v1261
        %v1862 = vpop.f32.mrf.mxu0
        %v1863 = vadd.f32 %v1774, %v1862
        %v1864 = vpop.f32.mrf.mxu0
        %v1865 = vadd.f32 %v1776, %v1864
        %1866 = vmatmul.bf16.gmra.mxu0 %v1263
        %v1867 = vpop.f32.mrf.mxu0
        %v1868 = vadd.f32 %v1779, %v1867
        %v1869 = vpop.f32.mrf.mxu0
        %v1870 = vadd.f32 %v1781, %v1869
        %1871 = vmatmul.bf16.gmra.mxu0 %v1265
        %v1872 = vpop.f32.mrf.mxu0
        %v1873 = vadd.f32 %v1784, %v1872
        %v1874 = vpop.f32.mrf.mxu0
        %v1875 = vadd.f32 %v1786, %v1874
        %1876 = vmatmul.bf16.gmra.mxu0 %v1267
        %v1877 = vpop.f32.mrf.mxu0
        %v1878 = vadd.f32 %v1789, %v1877
        %v1879 = vpop.f32.mrf.mxu0
        %v1880 = vadd.f32 %v1791, %v1879
        %1881 = vmatmul.bf16.gmra.mxu0 %v1269
        %v1882 = vpop.f32.mrf.mxu0
        %v1883 = vadd.f32 %v1794, %v1882
        %v1884 = vpop.f32.mrf.mxu0
        %v1885 = vadd.f32 %v1796, %v1884
        %1886 = vmatmul.bf16.gmra.mxu0 %v1271
        %v1887 = vpop.f32.mrf.mxu0
        %v1888 = vadd.f32 %v1799, %v1887
        %v1889 = vpop.f32.mrf.mxu0
        %v1890 = vadd.f32 %v1801, %v1889
        %1891 = vmatmul.bf16.gmra.mxu0 %v1273
        %v1892 = vpop.f32.mrf.mxu0
        %v1893 = vadd.f32 %v1804, %v1892
        %v1894 = vpop.f32.mrf.mxu0
        %v1895 = vadd.f32 %v1806, %v1894
        %1896 = vmatmul.bf16.gmra.mxu0 %v1275
        %v1897 = vpop.f32.mrf.mxu0
        %v1898 = vadd.f32 %v1809, %v1897
        %v1899 = vpop.f32.mrf.mxu0
        %v1900 = vadd.f32 %v1811, %v1899
        %1901 = vmatmul.bf16.gmra.mxu0 %v1277
        %v1902 = vpop.f32.mrf.mxu0
        %v1903 = vadd.f32 %v1814, %v1902
        %v1904 = vpop.f32.mrf.mxu0
        %v1905 = vadd.f32 %v1816, %v1904
        %1906 = vmatmul.bf16.gmra.mxu0 %v1279
        %v1907 = vpop.f32.mrf.mxu0
        %v1908 = vadd.f32 %v1819, %v1907
        %v1909 = vpop.f32.mrf.mxu0
        %v1910 = vadd.f32 %v1821, %v1909
        %1911 = vmatmul.bf16.gmra.mxu0 %v1281
        %v1912 = vpop.f32.mrf.mxu0
        %v1913 = vadd.f32 %v1824, %v1912
        %v1914 = vpop.f32.mrf.mxu0
        %v1915 = vadd.f32 %v1826, %v1914
        %1916 = vmatmul.bf16.gmra.mxu0 %v1283
        %v1917 = vpop.f32.mrf.mxu0
        %v1918 = vadd.f32 %v1829, %v1917
        %v1919 = vpop.f32.mrf.mxu0
        %v1920 = vadd.f32 %v1831, %v1919
        %1921 = vmatmul.bf16.gmra.mxu0 %v1285
        %v1922 = vpop.f32.mrf.mxu0
        %v1923 = vadd.f32 %v1834, %v1922
        %v1924 = vpop.f32.mrf.mxu0
        %v1925 = vadd.f32 %v1836, %v1924
        %1926 = vmatmul.bf16.gmra.mxu0 %v1287
        %v1927 = vpop.f32.mrf.mxu0
        %v1928 = vadd.f32 %v1839, %v1927
        %v1929 = vpop.f32.mrf.mxu0
        %v1930 = vadd.f32 %v1841, %v1929
        %1931 = vdwg.mxu0
        %1932 = vmatpush.bf16.msra.mxu0 %v1503
        %1933 = vmatpush.bf16.msra.mxu0 %v1500
        %1934 = vmatpush.bf16.msra.mxu0 %v1497
        %1935 = vmatpush.bf16.msra.mxu0 %v1494
        %1936 = vmatpush.bf16.msra.mxu0 %v1491
        %1937 = vmatpush.bf16.msra.mxu0 %v1488
        %1938 = vmatpush.bf16.msra.mxu0 %v1485
        %1939 = vmatpush.bf16.msra.mxu0 %v1482
        %1940 = vmatmul.bf16.gmra.mxu0 %v1256
        %v1941 = vpop.f32.mrf.mxu0
        %v1942 = vadd.f32 0.0, %v1941
        %v1943 = vpop.f32.mrf.mxu0
        %v1944 = vadd.f32 0.0, %v1943
        %1945 = vmatmul.bf16.gmra.mxu0 %v1258
        %v1946 = vpop.f32.mrf.mxu0
        %v1947 = vadd.f32 0.0, %v1946
        %v1948 = vpop.f32.mrf.mxu0
        %v1949 = vadd.f32 0.0, %v1948
        %1950 = vmatmul.bf16.gmra.mxu0 %v1260
        %v1951 = vpop.f32.mrf.mxu0
        %v1952 = vadd.f32 0.0, %v1951
        %v1953 = vpop.f32.mrf.mxu0
        %v1954 = vadd.f32 0.0, %v1953
        %1955 = vmatmul.bf16.gmra.mxu0 %v1262
        %v1956 = vpop.f32.mrf.mxu0
        %v1957 = vadd.f32 0.0, %v1956
        %v1958 = vpop.f32.mrf.mxu0
        %v1959 = vadd.f32 0.0, %v1958
        %1960 = vmatmul.bf16.gmra.mxu0 %v1264
        %v1961 = vpop.f32.mrf.mxu0
        %v1962 = vadd.f32 0.0, %v1961
        %v1963 = vpop.f32.mrf.mxu0
        %v1964 = vadd.f32 0.0, %v1963
        %1965 = vmatmul.bf16.gmra.mxu0 %v1266
        %v1966 = vpop.f32.mrf.mxu0
        %v1967 = vadd.f32 0.0, %v1966
        %v1968 = vpop.f32.mrf.mxu0
        %v1969 = vadd.f32 0.0, %v1968
        %1970 = vmatmul.bf16.gmra.mxu0 %v1268
        %v1971 = vpop.f32.mrf.mxu0
        %v1972 = vadd.f32 0.0, %v1971
        %v1973 = vpop.f32.mrf.mxu0
        %v1974 = vadd.f32 0.0, %v1973
        %1975 = vmatmul.bf16.gmra.mxu0 %v1270
        %v1976 = vpop.f32.mrf.mxu0
        %v1977 = vadd.f32 0.0, %v1976
        %v1978 = vpop.f32.mrf.mxu0
        %v1979 = vadd.f32 0.0, %v1978
        %1980 = vmatmul.bf16.gmra.mxu0 %v1272
        %v1981 = vpop.f32.mrf.mxu0
        %v1982 = vadd.f32 0.0, %v1981
        %v1983 = vpop.f32.mrf.mxu0
        %v1984 = vadd.f32 0.0, %v1983
        %1985 = vmatmul.bf16.gmra.mxu0 %v1274
        %v1986 = vpop.f32.mrf.mxu0
        %v1987 = vadd.f32 0.0, %v1986
        %v1988 = vpop.f32.mrf.mxu0
        %v1989 = vadd.f32 0.0, %v1988
        %1990 = vmatmul.bf16.gmra.mxu0 %v1276
        %v1991 = vpop.f32.mrf.mxu0
        %v1992 = vadd.f32 0.0, %v1991
        %v1993 = vpop.f32.mrf.mxu0
        %v1994 = vadd.f32 0.0, %v1993
        %1995 = vmatmul.bf16.gmra.mxu0 %v1278
        %v1996 = vpop.f32.mrf.mxu0
        %v1997 = vadd.f32 0.0, %v1996
        %v1998 = vpop.f32.mrf.mxu0
        %v1999 = vadd.f32 0.0, %v1998
        %2000 = vmatmul.bf16.gmra.mxu0 %v1280
        %v2001 = vpop.f32.mrf.mxu0
        %v2002 = vadd.f32 0.0, %v2001
        %v2003 = vpop.f32.mrf.mxu0
        %v2004 = vadd.f32 0.0, %v2003
        %2005 = vmatmul.bf16.gmra.mxu0 %v1282
        %v2006 = vpop.f32.mrf.mxu0
        %v2007 = vadd.f32 0.0, %v2006
        %v2008 = vpop.f32.mrf.mxu0
        %v2009 = vadd.f32 0.0, %v2008
        %2010 = vmatmul.bf16.gmra.mxu0 %v1284
        %v2011 = vpop.f32.mrf.mxu0
        %v2012 = vadd.f32 0.0, %v2011
        %v2013 = vpop.f32.mrf.mxu0
        %v2014 = vadd.f32 0.0, %v2013
        %2015 = vmatmul.bf16.gmra.mxu0 %v1286
        %v2016 = vpop.f32.mrf.mxu0
        %v2017 = vadd.f32 0.0, %v2016
        %v2018 = vpop.f32.mrf.mxu0
        %v2019 = vadd.f32 0.0, %v2018
        %2020 = vdwg.mxu0
        %2021 = vmatpush.bf16.msra.mxu0 %v1527
        %2022 = vmatpush.bf16.msra.mxu0 %v1524
        %2023 = vmatpush.bf16.msra.mxu0 %v1521
        %2024 = vmatpush.bf16.msra.mxu0 %v1518
        %2025 = vmatpush.bf16.msra.mxu0 %v1515
        %2026 = vmatpush.bf16.msra.mxu0 %v1512
        %2027 = vmatpush.bf16.msra.mxu0 %v1509
        %2028 = vmatpush.bf16.msra.mxu0 %v1506
        %2029 = vmatmul.bf16.gmra.mxu0 %v1257
        %v2030 = vpop.f32.mrf.mxu0
        %v2031 = vadd.f32 %v1942, %v2030
        %v2032 = vpop.f32.mrf.mxu0
        %v2033 = vadd.f32 %v1944, %v2032
        %2034 = vmatmul.bf16.gmra.mxu0 %v1259
        %v2035 = vpop.f32.mrf.mxu0
        %v2036 = vadd.f32 %v1947, %v2035
        %v2037 = vpop.f32.mrf.mxu0
        %v2038 = vadd.f32 %v1949, %v2037
        %2039 = vmatmul.bf16.gmra.mxu0 %v1261
        %v2040 = vpop.f32.mrf.mxu0
        %v2041 = vadd.f32 %v1952, %v2040
        %v2042 = vpop.f32.mrf.mxu0
        %v2043 = vadd.f32 %v1954, %v2042
        %2044 = vmatmul.bf16.gmra.mxu0 %v1263
        %v2045 = vpop.f32.mrf.mxu0
        %v2046 = vadd.f32 %v1957, %v2045
        %v2047 = vpop.f32.mrf.mxu0
        %v2048 = vadd.f32 %v1959, %v2047
        %2049 = vmatmul.bf16.gmra.mxu0 %v1265
        %v2050 = vpop.f32.mrf.mxu0
        %v2051 = vadd.f32 %v1962, %v2050
        %v2052 = vpop.f32.mrf.mxu0
        %v2053 = vadd.f32 %v1964, %v2052
        %2054 = vmatmul.bf16.gmra.mxu0 %v1267
        %v2055 = vpop.f32.mrf.mxu0
        %v2056 = vadd.f32 %v1967, %v2055
        %v2057 = vpop.f32.mrf.mxu0
        %v2058 = vadd.f32 %v1969, %v2057
        %2059 = vmatmul.bf16.gmra.mxu0 %v1269
        %v2060 = vpop.f32.mrf.mxu0
        %v2061 = vadd.f32 %v1972, %v2060
        %v2062 = vpop.f32.mrf.mxu0
        %v2063 = vadd.f32 %v1974, %v2062
        %2064 = vmatmul.bf16.gmra.mxu0 %v1271
        %v2065 = vpop.f32.mrf.mxu0
        %v2066 = vadd.f32 %v1977, %v2065
        %v2067 = vpop.f32.mrf.mxu0
        %v2068 = vadd.f32 %v1979, %v2067
        %2069 = vmatmul.bf16.gmra.mxu0 %v1273
        %v2070 = vpop.f32.mrf.mxu0
        %v2071 = vadd.f32 %v1982, %v2070
        %v2072 = vpop.f32.mrf.mxu0
        %v2073 = vadd.f32 %v1984, %v2072
        %2074 = vmatmul.bf16.gmra.mxu0 %v1275
        %v2075 = vpop.f32.mrf.mxu0
        %v2076 = vadd.f32 %v1987, %v2075
        %v2077 = vpop.f32.mrf.mxu0
        %v2078 = vadd.f32 %v1989, %v2077
        %2079 = vmatmul.bf16.gmra.mxu0 %v1277
        %v2080 = vpop.f32.mrf.mxu0
        %v2081 = vadd.f32 %v1992, %v2080
        %v2082 = vpop.f32.mrf.mxu0
        %v2083 = vadd.f32 %v1994, %v2082
        %2084 = vmatmul.bf16.gmra.mxu0 %v1279
        %v2085 = vpop.f32.mrf.mxu0
        %v2086 = vadd.f32 %v1997, %v2085
        %v2087 = vpop.f32.mrf.mxu0
        %v2088 = vadd.f32 %v1999, %v2087
        %2089 = vmatmul.bf16.gmra.mxu0 %v1281
        %v2090 = vpop.f32.mrf.mxu0
        %v2091 = vadd.f32 %v2002, %v2090
        %v2092 = vpop.f32.mrf.mxu0
        %v2093 = vadd.f32 %v2004, %v2092
        %2094 = vmatmul.bf16.gmra.mxu0 %v1283
        %v2095 = vpop.f32.mrf.mxu0
        %v2096 = vadd.f32 %v2007, %v2095
        %v2097 = vpop.f32.mrf.mxu0
        %v2098 = vadd.f32 %v2009, %v2097
        %2099 = vmatmul.bf16.gmra.mxu0 %v1285
        %v2100 = vpop.f32.mrf.mxu0
        %v2101 = vadd.f32 %v2012, %v2100
        %v2102 = vpop.f32.mrf.mxu0
        %v2103 = vadd.f32 %v2014, %v2102
        %2104 = vmatmul.bf16.gmra.mxu0 %v1287
        %v2105 = vpop.f32.mrf.mxu0
        %v2106 = vadd.f32 %v2017, %v2105
        %v2107 = vpop.f32.mrf.mxu0
        %v2108 = vadd.f32 %v2019, %v2107
        %2109 = vdwg.mxu0
        %v2110 = vpack.c.bf16 %v1853, %v1675
        %v2111 = vpack.c.bf16 %v2031, %v2031
        %v2112 = vpack.c.bf16 %v1855, %v1677
        %v2113 = vpack.c.bf16 %v2033, %v2033
        %v2114 = vpack.c.bf16 %v1858, %v1680
        %v2115 = vpack.c.bf16 %v2036, %v2036
        %v2116 = vpack.c.bf16 %v1860, %v1682
        %v2117 = vpack.c.bf16 %v2038, %v2038
        %v2118 = vpack.c.bf16 %v1863, %v1685
        %v2119 = vpack.c.bf16 %v2041, %v2041
        %v2120 = vpack.c.bf16 %v1865, %v1687
        %v2121 = vpack.c.bf16 %v2043, %v2043
        %v2122 = vpack.c.bf16 %v1868, %v1690
        %v2123 = vpack.c.bf16 %v2046, %v2046
        %v2124 = vpack.c.bf16 %v1870, %v1692
        %v2125 = vpack.c.bf16 %v2048, %v2048
        %v2126 = vpack.c.bf16 %v1873, %v1695
        %v2127 = vpack.c.bf16 %v2051, %v2051
        %v2128 = vpack.c.bf16 %v1875, %v1697
        %v2129 = vpack.c.bf16 %v2053, %v2053
        %v2130 = vpack.c.bf16 %v1878, %v1700
        %v2131 = vpack.c.bf16 %v2056, %v2056
        %v2132 = vpack.c.bf16 %v1880, %v1702
        %v2133 = vpack.c.bf16 %v2058, %v2058
        %v2134 = vpack.c.bf16 %v1883, %v1705
        %v2135 = vpack.c.bf16 %v2061, %v2061
        %v2136 = vpack.c.bf16 %v1885, %v1707
        %v2137 = vpack.c.bf16 %v2063, %v2063
        %v2138 = vpack.c.bf16 %v1888, %v1710
        %v2139 = vpack.c.bf16 %v2066, %v2066
        %v2140 = vpack.c.bf16 %v1890, %v1712
        %v2141 = vpack.c.bf16 %v2068, %v2068
        %v2142 = vpack.c.bf16 %v1893, %v1715
        %v2143 = vpack.c.bf16 %v2071, %v2071
        %v2144 = vpack.c.bf16 %v1895, %v1717
        %v2145 = vpack.c.bf16 %v2073, %v2073
        %v2146 = vpack.c.bf16 %v1898, %v1720
        %v2147 = vpack.c.bf16 %v2076, %v2076
        %v2148 = vpack.c.bf16 %v1900, %v1722
        %v2149 = vpack.c.bf16 %v2078, %v2078
        %v2150 = vpack.c.bf16 %v1903, %v1725
        %v2151 = vpack.c.bf16 %v2081, %v2081
        %v2152 = vpack.c.bf16 %v1905, %v1727
        %v2153 = vpack.c.bf16 %v2083, %v2083
        %v2154 = vpack.c.bf16 %v1908, %v1730
        %v2155 = vpack.c.bf16 %v2086, %v2086
        %v2156 = vpack.c.bf16 %v1910, %v1732
        %v2157 = vpack.c.bf16 %v2088, %v2088
        %v2158 = vpack.c.bf16 %v1913, %v1735
        %v2159 = vpack.c.bf16 %v2091, %v2091
        %v2160 = vpack.c.bf16 %v1915, %v1737
        %v2161 = vpack.c.bf16 %v2093, %v2093
        %v2162 = vpack.c.bf16 %v1918, %v1740
        %v2163 = vpack.c.bf16 %v2096, %v2096
        %v2164 = vpack.c.bf16 %v1920, %v1742
        %v2165 = vpack.c.bf16 %v2098, %v2098
        %v2166 = vpack.c.bf16 %v1923, %v1745
        %v2167 = vpack.c.bf16 %v2101, %v2101
        %v2168 = vpack.c.bf16 %v1925, %v1747
        %v2169 = vpack.c.bf16 %v2103, %v2103
        %v2170 = vpack.c.bf16 %v1928, %v1750
        %v2171 = vpack.c.bf16 %v2106, %v2106
        %v2172 = vpack.c.bf16 %v1930, %v1752
        %v2173 = vpack.c.bf16 %v2108, %v2108
        %2174 = vst [vmem:[%s242] sm:$0xff] %v2110
        %2175 = vst [vmem:[%s242 + $0x8] sm:$0xf] %v2111
        %2176 = vst [vmem:[%s242 + $0xc] sm:$0xff] %v2112
        %2177 = vst [vmem:[%s242 + $0x14] sm:$0xf] %v2113
        %2178 = vst [vmem:[%s242 + $0x18] sm:$0xff] %v2114
        %2179 = vst [vmem:[%s242 + $0x20] sm:$0xf] %v2115
        %2180 = vst [vmem:[%s242 + $0x24] sm:$0xff] %v2116
        %2181 = vst [vmem:[%s242 + $0x2c] sm:$0xf] %v2117
        %2182 = vst [vmem:[%s242 + $0x30] sm:$0xff] %v2118
        %2183 = vst [vmem:[%s242 + $0x38] sm:$0xf] %v2119
        %2184 = vst [vmem:[%s242 + $0x3c] sm:$0xff] %v2120
        %2185 = vst [vmem:[%s242 + $0x44] sm:$0xf] %v2121
        %2186 = vst [vmem:[%s242 + $0x48] sm:$0xff] %v2122
        %2187 = vst [vmem:[%s242 + $0x50] sm:$0xf] %v2123
        %2188 = vst [vmem:[%s242 + $0x54] sm:$0xff] %v2124
        %2189 = vst [vmem:[%s242 + $0x5c] sm:$0xf] %v2125
        %2190 = vst [vmem:[%s242 + $0x60] sm:$0xff] %v2126
        %2191 = vst [vmem:[%s242 + $0x68] sm:$0xf] %v2127
        %2192 = vst [vmem:[%s242 + $0x6c] sm:$0xff] %v2128
        %2193 = vst [vmem:[%s242 + $0x74] sm:$0xf] %v2129
        %2194 = vst [vmem:[%s242 + $0x78] sm:$0xff] %v2130
        %2195 = vst [vmem:[%s242 + $0x80] sm:$0xf] %v2131
        %2196 = vst [vmem:[%s242 + $0x84] sm:$0xff] %v2132
        %2197 = vst [vmem:[%s242 + $0x8c] sm:$0xf] %v2133
        %2198 = vst [vmem:[%s242 + $0x90] sm:$0xff] %v2134
        %2199 = vst [vmem:[%s242 + $0x98] sm:$0xf] %v2135
        %2200 = vst [vmem:[%s242 + $0x9c] sm:$0xff] %v2136
        %2201 = vst [vmem:[%s242 + $0xa4] sm:$0xf] %v2137
        %2202 = vst [vmem:[%s242 + $0xa8] sm:$0xff] %v2138
        %2203 = vst [vmem:[%s242 + $0xb0] sm:$0xf] %v2139
        %2204 = vst [vmem:[%s242 + $0xb4] sm:$0xff] %v2140
        %2205 = vst [vmem:[%s242 + $0xbc] sm:$0xf] %v2141
        %2206 = vst [vmem:[%s242 + $0xc0] sm:$0xff] %v2142
        %2207 = vst [vmem:[%s242 + $0xc8] sm:$0xf] %v2143
        %2208 = vst [vmem:[%s242 + $0xcc] sm:$0xff] %v2144
        %2209 = vst [vmem:[%s242 + $0xd4] sm:$0xf] %v2145
        %2210 = vst [vmem:[%s242 + $0xd8] sm:$0xff] %v2146
        %2211 = vst [vmem:[%s242 + $0xe0] sm:$0xf] %v2147
        %2212 = vst [vmem:[%s242 + $0xe4] sm:$0xff] %v2148
        %2213 = vst [vmem:[%s242 + $0xec] sm:$0xf] %v2149
        %2214 = vst [vmem:[%s242 + $0xf0] sm:$0xff] %v2150
        %2215 = vst [vmem:[%s242 + $0xf8] sm:$0xf] %v2151
        %2216 = vst [vmem:[%s242 + $0xfc] sm:$0xff] %v2152
        %2217 = vst [vmem:[%s242 + $0x104] sm:$0xf] %v2153
        %2218 = vst [vmem:[%s242 + $0x108] sm:$0xff] %v2154
        %2219 = vst [vmem:[%s242 + $0x110] sm:$0xf] %v2155
        %2220 = vst [vmem:[%s242 + $0x114] sm:$0xff] %v2156
        %2221 = vst [vmem:[%s242 + $0x11c] sm:$0xf] %v2157
        %2222 = vst [vmem:[%s242 + $0x120] sm:$0xff] %v2158
        %2223 = vst [vmem:[%s242 + $0x128] sm:$0xf] %v2159
        %2224 = vst [vmem:[%s242 + $0x12c] sm:$0xff] %v2160
        %2225 = vst [vmem:[%s242 + $0x134] sm:$0xf] %v2161
        %2226 = vst [vmem:[%s242 + $0x138] sm:$0xff] %v2162
        %2227 = vst [vmem:[%s242 + $0x140] sm:$0xf] %v2163
        %2228 = vst [vmem:[%s242 + $0x144] sm:$0xff] %v2164
        %2229 = vst [vmem:[%s242 + $0x14c] sm:$0xf] %v2165
        %2230 = vst [vmem:[%s242 + $0x150] sm:$0xff] %v2166
        %2231 = vst [vmem:[%s242 + $0x158] sm:$0xf] %v2167
        %2232 = vst [vmem:[%s242 + $0x15c] sm:$0xff] %v2168
        %2233 = vst [vmem:[%s242 + $0x164] sm:$0xf] %v2169
        %2234 = vst [vmem:[%s242 + $0x168] sm:$0xff] %v2170
        %2235 = vst [vmem:[%s242 + $0x170] sm:$0xf] %v2171
        %2236 = vst [vmem:[%s242 + $0x174] sm:$0xff] %v2172
        %2237 = vst [vmem:[%s242 + $0x17c] sm:$0xf] %v2173
        %s2238 = sand.u32 %s114, 1
        %s2239 = scalar_lea.sflag [#allocation5], %s2238
        %s2240 = sand.u32 %s114, 1
        %s2241 = smul.addr %s2240, 384
        %s2242 = scalar_lea.vmem [#allocation9], %s2241
        // Predicated region
        $region49: #{tpu_custom_call.1} parent=31 // pred_check
          %p2243 = pneg %p124
        $region50: #{tpu_custom_call.1} parent=31 // pred_check_branch
          %2245 = sbr.rel (%p2243) target = $region52
        $region51: #{tpu_custom_call.1} parent=31 // pred_region
          %s2246 = smul.u32 32, %s23
          %s2247 = smul.u32 3, %s24
          %2249 = vsyncadd %s2239, 0
          %s2250 = smul.addr %s2246, 6
          %s2251 = sadd.s32 %s2247, %s2250
          %s2252 = smul.addr %s2251, 4
          %s2253 = scalar_lea.hbm %s3, %s2252
          %s2254 = sshll.u32 %s2242, 4
          %s2255 = int_to_ptr.vmem [resolvable:$true] %s2254
          %s2256 = sshll.u32 %s2253, 4
          %s2257 = int_to_ptr.hbm [resolvable:$true] %s2256
          %2262 = dma.vmem_to_hbm [thread:$0]  %s2255, 6144, %s2257, %s2239, 192, 384, 12
        $region52: #{tpu_custom_call.1} parent=31 // pred_fallthru
          _
      $region32: #{tpu_custom_call.1} parent=5 // pred_fallthru
        _
      %p2263 = scmp.le.s32.totalorder 2, %s14
      // Predicated region
      $region53: #{tpu_custom_call.1} parent=5 // pred_check
        %p2264 = pneg %p2263
      $region54: #{tpu_custom_call.1} parent=5 // pred_check_branch
        %2266 = sbr.rel (%p2264) target = $region56
      $region55: #{tpu_custom_call.1} parent=5 // pred_region
        %s2267 = ssub.s32 %s14, 2
        // Predicated region
        $region57: #{tpu_custom_call.1} parent=55 // pred_check
          %p2268 = pneg %p130
        $region58: #{tpu_custom_call.1} parent=55 // pred_check_branch
          %2270 = sbr.rel (%p2268) target = $region60
        $region59: #{tpu_custom_call.1} parent=55 // pred_region
          %s2271 = sand.u32 %s115, 1
          %s2272 = scalar_lea.sflag [#allocation5], %s2271
          %s2273 = sand.u32 %s115, 1
          %s2274 = smul.addr %s2273, 384
          %s2275 = scalar_lea.vmem [#allocation9], %s2274
          %2277 = dma.done %s2272, 6144
        $region60: #{tpu_custom_call.1} parent=55 // pred_fallthru
          _
      $region56: #{tpu_custom_call.1} parent=5 // pred_fallthru
        _
    $region6: #{tpu_custom_call.1} parent=1 // loop_footer
      %s18 = sadd.s32 1, %s14
    $region7: #{tpu_custom_call.1} parent=1 // loop_footer_branch
      %13 = sbr.rel target = $region3
    $region8: #{tpu_custom_call.1} parent=1 // loop_exit
      _
    %2278 = vsyncpa [#allocation4], 1
    %s2279 = scalar_lea.sflag [#allocation4], 1
    %2280 = vsyncpa %s2279, 1
    %2281 = vsyncpa [#allocation7], 1
    %2282 = vsyncpa [#allocation5], 1
    %s2283 = scalar_lea.sflag [#allocation5], 1
    %2284 = vsyncpa %s2283, 1

</llo_original>
